<compile_context>
chip_gen: v7x
topology: tpu7x:2x2x1
jax: 0.10.0
libtpu: 0.0.40
codegen_flags: <defaults>
</compile_context>

<pallas_src>
import math

import jax
import jax.numpy as jnp
from jax import lax
from jax.experimental import pallas as pl
from jax.experimental.pallas import tpu as pltpu


# ----------------------------- helpers (used both in kernel & reference) ----
def _sigmoid(v):
    return 1.0 / (1.0 + jnp.exp(-v))


def _silu(v):
    return v * _sigmoid(v)


def _softplus(v):
    # threshold form (matches torch.nn.functional.softplus with beta=1)
    return jnp.where(v > 20.0, v, jnp.log1p(jnp.exp(jnp.minimum(v, 20.0))))


# ------------------------------------ Pallas kernel -------------------------
def mamba_kernel(
    x_ref,        # (1, L, d_model)
    w_in_ref,     # (d_model, 2*d_inner)
    conv_w_ref,   # (d_conv, d_inner)        depthwise taps (transposed)
    conv_b_ref,   # (1, d_inner)
    w_comb_ref,   # (d_inner, d_inner + 2*d_state)  x_proj with dt_proj folded in
    b_dt_ref,     # (1, d_inner)
    A_logT_ref,   # (d_state, d_inner)        A_log transposed (lane-dense)
    D_ref,        # (1, d_inner)
    w_out_ref,    # (d_inner, d_model)
    out_ref,      # (1, L, d_model)
    dA_sc,        # VMEM (TC, d_state, d_inner)
    dBx_sc,       # VMEM (TC, d_state, d_inner)  (reused in-place to hold hs)
):
    L = x_ref.shape[1]
    d_state, d_inner = A_logT_ref.shape
    d_conv = conv_w_ref.shape[0]
    TC = dA_sc.shape[0]
    n_chunks = L // TC

    x = x_ref[0]                                            # (L, d_model)

    # ---- in_proj ----
    xz = jnp.dot(x, w_in_ref[...], preferred_element_type=jnp.float32)
    xc = xz[:, :d_inner]                                    # (L, d_inner)
    z = xz[:, d_inner:]                                     # (L, d_inner)

    # ---- causal depthwise conv1d, fully in registers (roll + mask) ----
    # out[t] = sum_k w[k] * xc[t + k - (d_conv-1)],   xc[<0] = 0
    row = lax.broadcasted_iota(jnp.int32, (L, d_inner), 0)
    acc = jnp.broadcast_to(conv_b_ref[...], (L, d_inner))
    for k in range(d_conv):                                 # static unroll
        s = d_conv - 1 - k                                  # shift-down amount
        tap = conv_w_ref[k:k + 1, :]                        # (1, d_inner)
        if s == 0:
            shifted = xc
        else:
            shifted = jnp.where(row < s, 0.0, pltpu.roll(xc, shift=s, axis=0))
        acc = acc + shifted * tap
    xs = _silu(acc)                                         # (L, d_inner)

    # ---- x_proj (dt_proj already folded into w_comb in the wrapper) ----
    dbc = jnp.dot(xs, w_comb_ref[...], preferred_element_type=jnp.float32)
    delta = _softplus(dbc[:, :d_inner] + b_dt_ref[...])     # (L, d_inner)
    Bm = dbc[:, d_inner:d_inner + d_state]                  # (L, d_state)
    Cm = dbc[:, d_inner + d_state:d_inner + 2 * d_state]    # (L, d_state)

    A = -jnp.exp(A_logT_ref[...])                           # (d_state, d_inner)
    dx = delta * xs                                         # (L, d_inner)

    # ---- chunked, fused discretize + selective scan + C readout ----
    # state layout: (d_state, d_inner)  -> d_inner on lanes (dense)
    h = jnp.zeros((d_state, d_inner), jnp.float32)
    y_chunks = []
    for c in range(n_chunks):                               # static chunk loop
        t0 = c * TC
        delta_c = delta[t0:t0 + TC]                         # (TC, d_inner)
        dx_c = dx[t0:t0 + TC]                               # (TC, d_inner)
        B_c = Bm[t0:t0 + TC]                                # (TC, d_state)
        C_c = Cm[t0:t0 + TC]                                # (TC, d_state)

        dA_sc[...] = jnp.exp(delta_c[:, None, :] * A[None, :, :])
        dBx_sc[...] = dx_c[:, None, :] * B_c[:, :, None]

        def body(t, hh):
            hh = dA_sc[t] * hh + dBx_sc[t]
            dBx_sc[t] = hh          # overwrite dBx slot with h_t (becomes hs)
            return hh

        h = lax.fori_loop(0, TC, body, h, unroll=min(TC, 8))

        # vectorized readout for the chunk: y[t] = sum_s h[t,s,:] * C[t,s]
        hs_c = dBx_sc[...]                                  # (TC, d_state, d_inner)
        y_chunks.append(jnp.sum(hs_c * C_c[:, :, None], axis=1))   # (TC, d_inner)

    y = y_chunks[0] if n_chunks == 1 else jnp.concatenate(y_chunks, axis=0)
    y = y + D_ref[...] * xs                                 # (L, d_inner)

    # ---- gate + out_proj ----
    out = jnp.dot(y * _silu(z), w_out_ref[...], preferred_element_type=jnp.float32)
    out_ref[0] = out


# ------------------------------------ wrapper --------------------------------
def mamba_block_forward(x, p, *, d_conv, d_state, dt_rank, time_chunk=64):
    B, L, d_model = x.shape
    d_inner = p["A_log"].shape[0]

    TC = min(time_chunk, L)
    assert L % TC == 0, "sequence length must be a multiple of the time chunk"

    hp = jax.lax.Precision.HIGHEST
    # Fold dt_proj (K = dt_rank ~ 2, terrible MXU shape) into x_proj:
    #   delta_pre = xs @ (w_x[:, :r] @ w_dt) ;  B, C = xs @ w_x[:, r:]
    w_comb = jnp.concatenate(
        [jnp.dot(p["w_x"][:, :dt_rank], p["w_dt"], precision=hp),
         p["w_x"][:, dt_rank:]],
        axis=1,
    )                                                       # (d_inner, d_inner + 2*d_state)
    A_logT = p["A_log"].T                                   # (d_state, d_inner)

    full = lambda shape: pl.BlockSpec(shape, lambda b: (0,) * len(shape))

    return pl.pallas_call(
        mamba_kernel,
        out_shape=jax.ShapeDtypeStruct((B, L, d_model), jnp.float32),
        grid=(B,),
        in_specs=[
            pl.BlockSpec((1, L, d_model), lambda b: (b, 0, 0)),
            full(p["w_in"].shape),
            full(p["conv_w"].shape),
            full(p["conv_b"].shape),
            full(w_comb.shape),
            full(p["b_dt"].shape),
            full(A_logT.shape),
            full(p["D"].shape),
            full(p["w_out"].shape),
        ],
        out_specs=pl.BlockSpec((1, L, d_model), lambda b: (b, 0, 0)),
        scratch_shapes=[
            pltpu.VMEM((TC, d_state, d_inner), jnp.float32),
            pltpu.VMEM((TC, d_state, d_inner), jnp.float32),
        ],
        compiler_params=pltpu.CompilerParams(
            # batch iterations are independent -> shard across TCs on v7x
            dimension_semantics=("parallel",),
            # explicit scoped-VMEM budget (headroom below 64 MiB v7x physical)
            vmem_limit_bytes=48 * 1024 * 1024,
        ),
    )(
        x, p["w_in"], p["conv_w"], p["conv_b"], w_comb, p["b_dt"],
        A_logT, p["D"], p["w_out"],
    )


# ------------------------------------ pure-JAX reference ---------------------
def mamba_reference(x, p, *, d_conv, d_state, dt_rank):
    B, L, d_model = x.shape
    d_inner = p["A_log"].shape[0]
    hp = jax.lax.Precision.HIGHEST

    xz = jnp.dot(x, p["w_in"], precision=hp)
    xc, z = xz[..., :d_inner], xz[..., d_inner:]

    xpad = jnp.pad(xc, ((0, 0), (d_conv - 1, 0), (0, 0)))
    conv = jnp.zeros((B, L, d_inner), jnp.float32)
    for k in range(d_conv):
        conv = conv + xpad[:, k:k + L, :] * p["conv_w"][k][None, None, :]
    conv = conv + p["conv_b"][None, :, :].reshape(1, 1, d_inner)
    xs = _silu(conv)

    dbc = jnp.dot(xs, p["w_x"], precision=hp)
    delta_r = dbc[..., :dt_rank]
    Bm = dbc[..., dt_rank:dt_rank + d_state]
    Cm = dbc[..., dt_rank + d_state:]
    delta = _softplus(jnp.dot(delta_r, p["w_dt"], precision=hp) + p["b_dt"])

    A = -jnp.exp(p["A_log"])
    dA = jnp.exp(delta[..., None] * A[None, None, :, :])
    dBx = delta[..., None] * Bm[:, :, None, :] * xs[..., None]

    def step(h, inp):
        da_t, dbx_t = inp
        h = da_t * h + dbx_t
        return h, h

    h0 = jnp.zeros((B, d_inner, d_state), jnp.float32)
    _, hs = lax.scan(step, h0, (jnp.swapaxes(dA, 0, 1), jnp.swapaxes(dBx, 0, 1)))
    hs = jnp.swapaxes(hs, 0, 1)                              # (B, L, d_inner, d_state)

    y = jnp.sum(hs * Cm[:, :, None, :], axis=-1) + p["D"].reshape(1, 1, d_inner) * xs
    return jnp.dot(y * _silu(z), p["w_out"], precision=hp)


# ------------------------------------ main ------------------------------------
if __name__ == "__main__":
    # MambaConfig(d_model=32): d_inner=64, dt_rank=ceil(32/16)=2, d_state=16, d_conv=4
    B, L, d_model = 2, 8, 32
    d_inner = 2 * d_model
    dt_rank = math.ceil(d_model / 16)
    d_state = 16
    d_conv = 4
    dt_min, dt_max, dt_init_floor, dt_scale = 0.001, 0.1, 0.0001, 1.0

    key = jax.random.PRNGKey(0)
    k = jax.random.split(key, 8)

    dt_init_std = dt_rank ** (-0.5) * dt_scale
    dt = jnp.exp(
        jax.random.uniform(k[4], (d_inner,), dtype=jnp.float32)
        * (math.log(dt_max) - math.log(dt_min)) + math.log(dt_min)
    )
    dt = jnp.maximum(dt, dt_init_floor)
    inv_dt = dt + jnp.log(-jnp.expm1(-dt))

    params = {
        # linear weights stored transposed (in_features, out_features)
        "w_in":   (jax.random.normal(k[0], (d_model, 2 * d_inner), jnp.float32)
                   / math.sqrt(d_model)),
        "conv_w": jax.random.normal(k[1], (d_conv, d_inner), jnp.float32) * 0.2,
        "conv_b": jax.random.normal(k[2], (1, d_inner), jnp.float32) * 0.1,
        "w_x":    (jax.random.normal(k[3], (d_inner, dt_rank + 2 * d_state), jnp.float32)
                   / math.sqrt(d_inner)),
        "w_dt":   jax.random.uniform(k[5], (dt_rank, d_inner), jnp.float32,
                                     minval=-dt_init_std, maxval=dt_init_std),
        "b_dt":   inv_dt.reshape(1, d_inner),
        "A_log":  jnp.log(jnp.tile(jnp.arange(1, d_state + 1, dtype=jnp.float32),
                                   (d_inner, 1))),
        "D":      jnp.ones((1, d_inner), jnp.float32),
        "w_out":  (jax.random.normal(k[6], (d_inner, d_model), jnp.float32)
                   / math.sqrt(d_inner)),
    }

    x = jax.random.normal(k[7], (B, L, d_model), dtype=jnp.float32)

    out = mamba_block_forward(x, params, d_conv=d_conv, d_state=d_state,
                              dt_rank=dt_rank)
    out = jax.block_until_ready(out)

    ref = mamba_reference(x, params, d_conv=d_conv, d_state=d_state, dt_rank=dt_rank)
    assert out.shape == (B, L, d_model)
    assert jnp.allclose(out, ref, atol=1e-2, rtol=1e-2), (
        f"max abs err = {float(jnp.max(jnp.abs(out - ref)))}"
    )

    print("KERNEL_OK")
</pallas_src>

<mosaic_0001>
module attributes {stable_mosaic.version = 11 : i64} {
  func.func @mamba_kernel(%arg0: i32, %arg1: memref<1x8x32xf32, #tpu.memory_space<vmem>>, %arg2: memref<32x128xf32, #tpu.memory_space<vmem>>, %arg3: memref<4x64xf32, #tpu.memory_space<vmem>>, %arg4: memref<1x64xf32, #tpu.memory_space<vmem>>, %arg5: memref<64x96xf32, #tpu.memory_space<vmem>>, %arg6: memref<1x64xf32, #tpu.memory_space<vmem>>, %arg7: memref<16x64xf32, #tpu.memory_space<vmem>>, %arg8: memref<1x64xf32, #tpu.memory_space<vmem>>, %arg9: memref<64x32xf32, #tpu.memory_space<vmem>>, %arg10: memref<1x8x32xf32, #tpu.memory_space<vmem>>, %arg11: memref<8x16x64xf32, #tpu.memory_space<vmem>>, %arg12: memref<8x16x64xf32, #tpu.memory_space<vmem>>) attributes {dimension_semantics = [#tpu.dimension_semantics<parallel>], iteration_bounds = array<i64: 2>, scalar_prefetch = 0 : i64, scratch_operands = 2 : i64, tpu.core_type = #tpu.core_type<tc>, window_params = [{transform_indices = @transform_0, window_bounds = array<i64: 1, 8, 32>}, {pipeline_mode = #tpu.pipeline_mode<synchronous>, transform_indices = @transform_1, window_bounds = array<i64: 32, 128>}, {pipeline_mode = #tpu.pipeline_mode<synchronous>, transform_indices = @transform_2, window_bounds = array<i64: 4, 64>}, {pipeline_mode = #tpu.pipeline_mode<synchronous>, transform_indices = @transform_3, window_bounds = array<i64: 1, 64>}, {pipeline_mode = #tpu.pipeline_mode<synchronous>, transform_indices = @transform_4, window_bounds = array<i64: 64, 96>}, {pipeline_mode = #tpu.pipeline_mode<synchronous>, transform_indices = @transform_5, window_bounds = array<i64: 1, 64>}, {pipeline_mode = #tpu.pipeline_mode<synchronous>, transform_indices = @transform_6, window_bounds = array<i64: 16, 64>}, {pipeline_mode = #tpu.pipeline_mode<synchronous>, transform_indices = @transform_7, window_bounds = array<i64: 1, 64>}, {pipeline_mode = #tpu.pipeline_mode<synchronous>, transform_indices = @transform_8, window_bounds = array<i64: 64, 32>}, {transform_indices = @transform_9, window_bounds = array<i64: 1, 8, 32>}]} {
    %c0 = arith.constant 0 : index
    %c0_0 = arith.constant 0 : index
    %c0_1 = arith.constant 0 : index
    %0 = vector.load %arg1[%c0, %c0_0, %c0_1] : memref<1x8x32xf32, #tpu.memory_space<vmem>>, vector<1x8x32xf32>
    %1 = vector.shape_cast %0 : vector<1x8x32xf32> to vector<8x32xf32>
    %c0_2 = arith.constant 0 : index
    %c0_3 = arith.constant 0 : index
    %2 = vector.load %arg2[%c0_2, %c0_3] : memref<32x128xf32, #tpu.memory_space<vmem>>, vector<32x128xf32>
    %cst = arith.constant dense<0.000000e+00> : vector<8x128xf32>
    %3 = tpu.matmul %1, %2, %cst {dimension_numbers = #tpu.dot_dimension_numbers<[1], [0], [0], [1], [0, 0, 1, 1], [], []>} : vector<8x32xf32>, vector<32x128xf32>, vector<8x128xf32> -> vector<8x128xf32>
    %4 = vector.extract_strided_slice %3 {offsets = [0, 0], sizes = [8, 64], strides = [1, 1]} : vector<8x128xf32> to vector<8x64xf32>
    %5 = vector.extract_strided_slice %3 {offsets = [0, 64], sizes = [8, 64], strides = [1, 1]} : vector<8x128xf32> to vector<8x64xf32>
    %6 = tpu.iota {dimensions = array<i32: 0>} : vector<8x64xi32>
    %c0_4 = arith.constant 0 : index
    %c0_5 = arith.constant 0 : index
    %7 = vector.load %arg4[%c0_4, %c0_5] : memref<1x64xf32, #tpu.memory_space<vmem>>, vector<1x64xf32>
    %8 = vector.shape_cast %7 : vector<1x64xf32> to vector<1x64xf32>
    %9 = vector.broadcast %8 : vector<1x64xf32> to vector<8x64xf32>
    %c0_6 = arith.constant 0 : index
    %c0_7 = arith.constant 0 : index
    %10 = vector.load %arg3[%c0_6, %c0_7] : memref<4x64xf32, #tpu.memory_space<vmem>>, vector<1x64xf32>
    %c3_i32 = arith.constant 3 : i32
    %11 = vector.broadcast %c3_i32 : i32 to vector<8x64xi32>
    %12 = arith.cmpi slt, %6, %11 : vector<8x64xi32>
    %c3_i32_8 = arith.constant 3 : i32
    %13 = tpu.dynamic_rotate %4 by %c3_i32_8 dim 0 : vector<8x64xf32>, i32 -> vector<8x64xf32>
    %cst_9 = arith.constant 0.000000e+00 : f32
    %14 = vector.broadcast %cst_9 : f32 to vector<8x64xf32>
    %15 = arith.select %12, %14, %13 : vector<8x64xi1>, vector<8x64xf32>
    %16 = vector.broadcast %10 : vector<1x64xf32> to vector<8x64xf32>
    %17 = arith.mulf %15, %16 : vector<8x64xf32>
    %18 = arith.addf %9, %17 : vector<8x64xf32>
    %c1 = arith.constant 1 : index
    %c0_10 = arith.constant 0 : index
    %19 = vector.load %arg3[%c1, %c0_10] : memref<4x64xf32, #tpu.memory_space<vmem>>, vector<1x64xf32>
    %c2_i32 = arith.constant 2 : i32
    %20 = vector.broadcast %c2_i32 : i32 to vector<8x64xi32>
    %21 = arith.cmpi slt, %6, %20 : vector<8x64xi32>
    %c2_i32_11 = arith.constant 2 : i32
    %22 = tpu.dynamic_rotate %4 by %c2_i32_11 dim 0 : vector<8x64xf32>, i32 -> vector<8x64xf32>
    %cst_12 = arith.constant 0.000000e+00 : f32
    %23 = vector.broadcast %cst_12 : f32 to vector<8x64xf32>
    %24 = arith.select %21, %23, %22 : vector<8x64xi1>, vector<8x64xf32>
    %25 = vector.broadcast %19 : vector<1x64xf32> to vector<8x64xf32>
    %26 = arith.mulf %24, %25 : vector<8x64xf32>
    %27 = arith.addf %18, %26 : vector<8x64xf32>
    %c2 = arith.constant 2 : index
    %c0_13 = arith.constant 0 : index
    %28 = vector.load %arg3[%c2, %c0_13] : memref<4x64xf32, #tpu.memory_space<vmem>>, vector<1x64xf32>
    %c1_i32 = arith.constant 1 : i32
    %29 = vector.broadcast %c1_i32 : i32 to vector<8x64xi32>
    %30 = arith.cmpi slt, %6, %29 : vector<8x64xi32>
    %c1_i32_14 = arith.constant 1 : i32
    %31 = tpu.dynamic_rotate %4 by %c1_i32_14 dim 0 : vector<8x64xf32>, i32 -> vector<8x64xf32>
    %cst_15 = arith.constant 0.000000e+00 : f32
    %32 = vector.broadcast %cst_15 : f32 to vector<8x64xf32>
    %33 = arith.select %30, %32, %31 : vector<8x64xi1>, vector<8x64xf32>
    %34 = vector.broadcast %28 : vector<1x64xf32> to vector<8x64xf32>
    %35 = arith.mulf %33, %34 : vector<8x64xf32>
    %36 = arith.addf %27, %35 : vector<8x64xf32>
    %c3 = arith.constant 3 : index
    %c0_16 = arith.constant 0 : index
    %37 = vector.load %arg3[%c3, %c0_16] : memref<4x64xf32, #tpu.memory_space<vmem>>, vector<1x64xf32>
    %38 = vector.broadcast %37 : vector<1x64xf32> to vector<8x64xf32>
    %39 = arith.mulf %4, %38 : vector<8x64xf32>
    %40 = arith.addf %36, %39 : vector<8x64xf32>
    %cst_17 = arith.constant 0.000000e+00 : f32
    %41 = vector.broadcast %cst_17 : f32 to vector<8x64xf32>
    %42 = arith.subf %41, %40 : vector<8x64xf32>
    %43 = math.exp %42 : vector<8x64xf32>
    %cst_18 = arith.constant 1.000000e+00 : f32
    %44 = vector.broadcast %cst_18 : f32 to vector<8x64xf32>
    %45 = arith.addf %44, %43 : vector<8x64xf32>
    %cst_19 = arith.constant 1.000000e+00 : f32
    %46 = vector.broadcast %cst_19 : f32 to vector<8x64xf32>
    %47 = arith.divf %46, %45 : vector<8x64xf32>
    %48 = arith.mulf %40, %47 : vector<8x64xf32>
    %c0_20 = arith.constant 0 : index
    %c0_21 = arith.constant 0 : index
    %49 = vector.load %arg5[%c0_20, %c0_21] : memref<64x96xf32, #tpu.memory_space<vmem>>, vector<64x96xf32>
    %cst_22 = arith.constant dense<0.000000e+00> : vector<8x96xf32>
    %50 = tpu.matmul %48, %49, %cst_22 {dimension_numbers = #tpu.dot_dimension_numbers<[1], [0], [0], [1], [0, 0, 1, 1], [], []>} : vector<8x64xf32>, vector<64x96xf32>, vector<8x96xf32> -> vector<8x96xf32>
    %51 = vector.extract_strided_slice %50 {offsets = [0, 0], sizes = [8, 64], strides = [1, 1]} : vector<8x96xf32> to vector<8x64xf32>
    %c0_23 = arith.constant 0 : index
    %c0_24 = arith.constant 0 : index
    %52 = vector.load %arg6[%c0_23, %c0_24] : memref<1x64xf32, #tpu.memory_space<vmem>>, vector<1x64xf32>
    %53 = vector.broadcast %52 : vector<1x64xf32> to vector<8x64xf32>
    %54 = arith.addf %51, %53 : vector<8x64xf32>
    %cst_25 = arith.constant 2.000000e+01 : f32
    %55 = vector.broadcast %cst_25 : f32 to vector<8x64xf32>
    %56 = arith.cmpf ogt, %54, %55 : vector<8x64xf32>
    %cst_26 = arith.constant 2.000000e+01 : f32
    %57 = vector.broadcast %cst_26 : f32 to vector<8x64xf32>
    %58 = arith.minimumf %54, %57 : vector<8x64xf32>
    %59 = math.exp %58 : vector<8x64xf32>
    %60 = math.log1p %59 : vector<8x64xf32>
    %61 = arith.select %56, %54, %60 : vector<8x64xi1>, vector<8x64xf32>
    %62 = vector.extract_strided_slice %50 {offsets = [0, 64], sizes = [8, 16], strides = [1, 1]} : vector<8x96xf32> to vector<8x16xf32>
    %63 = vector.extract_strided_slice %50 {offsets = [0, 80], sizes = [8, 16], strides = [1, 1]} : vector<8x96xf32> to vector<8x16xf32>
    %c0_27 = arith.constant 0 : index
    %c0_28 = arith.constant 0 : index
    %64 = vector.load %arg7[%c0_27, %c0_28] : memref<16x64xf32, #tpu.memory_space<vmem>>, vector<16x64xf32>
    %65 = math.exp %64 : vector<16x64xf32>
    %cst_29 = arith.constant 0.000000e+00 : f32
    %66 = vector.broadcast %cst_29 : f32 to vector<16x64xf32>
    %67 = arith.subf %66, %65 : vector<16x64xf32>
    %68 = arith.mulf %61, %48 : vector<8x64xf32>
    %cst_30 = arith.constant 0.000000e+00 : f32
    %69 = vector.broadcast %cst_30 : f32 to vector<16x64xf32>
    %70 = vector.shape_cast %61 : vector<8x64xf32> to vector<8x1x64xf32>
    %71 = vector.shape_cast %67 : vector<16x64xf32> to vector<1x16x64xf32>
    %72 = vector.broadcast %70 : vector<8x1x64xf32> to vector<8x16x64xf32>
    %73 = vector.broadcast %71 : vector<1x16x64xf32> to vector<8x16x64xf32>
    %74 = arith.mulf %72, %73 : vector<8x16x64xf32>
    %75 = math.exp %74 : vector<8x16x64xf32>
    %c0_31 = arith.constant 0 : index
    %c0_32 = arith.constant 0 : index
    %c0_33 = arith.constant 0 : index
    %76 = vector.load %arg11[%c0_31, %c0_32, %c0_33] : memref<8x16x64xf32, #tpu.memory_space<vmem>>, vector<8x16x64xf32>
    tpu.vector_store %arg11[%c0_31, %c0_32, %c0_33], %75 {strides = array<i32>} : memref<8x16x64xf32, #tpu.memory_space<vmem>>, vector<8x16x64xf32>,
    %77 = vector.shape_cast %68 : vector<8x64xf32> to vector<8x1x64xf32>
    %78 = vector.shape_cast %62 : vector<8x16xf32> to vector<8x16x1xf32>
    %79 = vector.broadcast %77 : vector<8x1x64xf32> to vector<8x16x64xf32>
    %80 = vector.broadcast %78 : vector<8x16x1xf32> to vector<8x16x64xf32>
    %81 = arith.mulf %79, %80 : vector<8x16x64xf32>
    %c0_34 = arith.constant 0 : index
    %c0_35 = arith.constant 0 : index
    %c0_36 = arith.constant 0 : index
    %82 = vector.load %arg12[%c0_34, %c0_35, %c0_36] : memref<8x16x64xf32, #tpu.memory_space<vmem>>, vector<8x16x64xf32>
    tpu.vector_store %arg12[%c0_34, %c0_35, %c0_36], %81 {strides = array<i32>} : memref<8x16x64xf32, #tpu.memory_space<vmem>>, vector<8x16x64xf32>,
    %c0_i32 = arith.constant 0 : i32
    %83 = arith.index_cast %c0_i32 : i32 to index
    %c0_37 = arith.constant 0 : index
    %c0_38 = arith.constant 0 : index
    %84 = vector.load %arg11[%83, %c0_37, %c0_38] : memref<8x16x64xf32, #tpu.memory_space<vmem>>, vector<1x16x64xf32>
    %85 = vector.shape_cast %84 : vector<1x16x64xf32> to vector<16x64xf32>
    %86 = arith.mulf %85, %69 : vector<16x64xf32>
    %87 = arith.index_cast %c0_i32 : i32 to index
    %c0_39 = arith.constant 0 : index
    %c0_40 = arith.constant 0 : index
    %88 = vector.load %arg12[%87, %c0_39, %c0_40] : memref<8x16x64xf32, #tpu.memory_space<vmem>>, vector<1x16x64xf32>
    %89 = vector.shape_cast %88 : vector<1x16x64xf32> to vector<16x64xf32>
    %90 = arith.addf %86, %89 : vector<16x64xf32>
    %91 = arith.index_cast %c0_i32 : i32 to index
    %c0_41 = arith.constant 0 : index
    %c0_42 = arith.constant 0 : index
    %92 = vector.load %arg12[%91, %c0_41, %c0_42] : memref<8x16x64xf32, #tpu.memory_space<vmem>>, vector<1x16x64xf32>
    %93 = vector.shape_cast %92 : vector<1x16x64xf32> to vector<16x64xf32>
    %94 = vector.shape_cast %90 : vector<16x64xf32> to vector<1x16x64xf32>
    tpu.vector_store %arg12[%91, %c0_41, %c0_42], %94 {strides = array<i32>} : memref<8x16x64xf32, #tpu.memory_space<vmem>>, vector<1x16x64xf32>,
    %c1_i32_43 = arith.constant 1 : i32
    %95 = arith.index_cast %c1_i32_43 : i32 to index
    %c0_44 = arith.constant 0 : index
    %c0_45 = arith.constant 0 : index
    %96 = vector.load %arg11[%95, %c0_44, %c0_45] : memref<8x16x64xf32, #tpu.memory_space<vmem>>, vector<1x16x64xf32>
    %97 = vector.shape_cast %96 : vector<1x16x64xf32> to vector<16x64xf32>
    %98 = arith.mulf %97, %90 : vector<16x64xf32>
    %99 = arith.index_cast %c1_i32_43 : i32 to index
    %c0_46 = arith.constant 0 : index
    %c0_47 = arith.constant 0 : index
    %100 = vector.load %arg12[%99, %c0_46, %c0_47] : memref<8x16x64xf32, #tpu.memory_space<vmem>>, vector<1x16x64xf32>
    %101 = vector.shape_cast %100 : vector<1x16x64xf32> to vector<16x64xf32>
    %102 = arith.addf %98, %101 : vector<16x64xf32>
    %103 = arith.index_cast %c1_i32_43 : i32 to index
    %c0_48 = arith.constant 0 : index
    %c0_49 = arith.constant 0 : index
    %104 = vector.load %arg12[%103, %c0_48, %c0_49] : memref<8x16x64xf32, #tpu.memory_space<vmem>>, vector<1x16x64xf32>
    %105 = vector.shape_cast %104 : vector<1x16x64xf32> to vector<16x64xf32>
    %106 = vector.shape_cast %102 : vector<16x64xf32> to vector<1x16x64xf32>
    tpu.vector_store %arg12[%103, %c0_48, %c0_49], %106 {strides = array<i32>} : memref<8x16x64xf32, #tpu.memory_space<vmem>>, vector<1x16x64xf32>,
    %c2_i32_50 = arith.constant 2 : i32
    %107 = arith.index_cast %c2_i32_50 : i32 to index
    %c0_51 = arith.constant 0 : index
    %c0_52 = arith.constant 0 : index
    %108 = vector.load %arg11[%107, %c0_51, %c0_52] : memref<8x16x64xf32, #tpu.memory_space<vmem>>, vector<1x16x64xf32>
    %109 = vector.shape_cast %108 : vector<1x16x64xf32> to vector<16x64xf32>
    %110 = arith.mulf %109, %102 : vector<16x64xf32>
    %111 = arith.index_cast %c2_i32_50 : i32 to index
    %c0_53 = arith.constant 0 : index
    %c0_54 = arith.constant 0 : index
    %112 = vector.load %arg12[%111, %c0_53, %c0_54] : memref<8x16x64xf32, #tpu.memory_space<vmem>>, vector<1x16x64xf32>
    %113 = vector.shape_cast %112 : vector<1x16x64xf32> to vector<16x64xf32>
    %114 = arith.addf %110, %113 : vector<16x64xf32>
    %115 = arith.index_cast %c2_i32_50 : i32 to index
    %c0_55 = arith.constant 0 : index
    %c0_56 = arith.constant 0 : index
    %116 = vector.load %arg12[%115, %c0_55, %c0_56] : memref<8x16x64xf32, #tpu.memory_space<vmem>>, vector<1x16x64xf32>
    %117 = vector.shape_cast %116 : vector<1x16x64xf32> to vector<16x64xf32>
    %118 = vector.shape_cast %114 : vector<16x64xf32> to vector<1x16x64xf32>
    tpu.vector_store %arg12[%115, %c0_55, %c0_56], %118 {strides = array<i32>} : memref<8x16x64xf32, #tpu.memory_space<vmem>>, vector<1x16x64xf32>,
    %c3_i32_57 = arith.constant 3 : i32
    %119 = arith.index_cast %c3_i32_57 : i32 to index
    %c0_58 = arith.constant 0 : index
    %c0_59 = arith.constant 0 : index
    %120 = vector.load %arg11[%119, %c0_58, %c0_59] : memref<8x16x64xf32, #tpu.memory_space<vmem>>, vector<1x16x64xf32>
    %121 = vector.shape_cast %120 : vector<1x16x64xf32> to vector<16x64xf32>
    %122 = arith.mulf %121, %114 : vector<16x64xf32>
    %123 = arith.index_cast %c3_i32_57 : i32 to index
    %c0_60 = arith.constant 0 : index
    %c0_61 = arith.constant 0 : index
    %124 = vector.load %arg12[%123, %c0_60, %c0_61] : memref<8x16x64xf32, #tpu.memory_space<vmem>>, vector<1x16x64xf32>
    %125 = vector.shape_cast %124 : vector<1x16x64xf32> to vector<16x64xf32>
    %126 = arith.addf %122, %125 : vector<16x64xf32>
    %127 = arith.index_cast %c3_i32_57 : i32 to index
    %c0_62 = arith.constant 0 : index
    %c0_63 = arith.constant 0 : index
    %128 = vector.load %arg12[%127, %c0_62, %c0_63] : memref<8x16x64xf32, #tpu.memory_space<vmem>>, vector<1x16x64xf32>
    %129 = vector.shape_cast %128 : vector<1x16x64xf32> to vector<16x64xf32>
    %130 = vector.shape_cast %126 : vector<16x64xf32> to vector<1x16x64xf32>
    tpu.vector_store %arg12[%127, %c0_62, %c0_63], %130 {strides = array<i32>} : memref<8x16x64xf32, #tpu.memory_space<vmem>>, vector<1x16x64xf32>,
    %c4_i32 = arith.constant 4 : i32
    %131 = arith.index_cast %c4_i32 : i32 to index
    %c0_64 = arith.constant 0 : index
    %c0_65 = arith.constant 0 : index
    %132 = vector.load %arg11[%131, %c0_64, %c0_65] : memref<8x16x64xf32, #tpu.memory_space<vmem>>, vector<1x16x64xf32>
    %133 = vector.shape_cast %132 : vector<1x16x64xf32> to vector<16x64xf32>
    %134 = arith.mulf %133, %126 : vector<16x64xf32>
    %135 = arith.index_cast %c4_i32 : i32 to index
    %c0_66 = arith.constant 0 : index
    %c0_67 = arith.constant 0 : index
    %136 = vector.load %arg12[%135, %c0_66, %c0_67] : memref<8x16x64xf32, #tpu.memory_space<vmem>>, vector<1x16x64xf32>
    %137 = vector.shape_cast %136 : vector<1x16x64xf32> to vector<16x64xf32>
    %138 = arith.addf %134, %137 : vector<16x64xf32>
    %139 = arith.index_cast %c4_i32 : i32 to index
    %c0_68 = arith.constant 0 : index
    %c0_69 = arith.constant 0 : index
    %140 = vector.load %arg12[%139, %c0_68, %c0_69] : memref<8x16x64xf32, #tpu.memory_space<vmem>>, vector<1x16x64xf32>
    %141 = vector.shape_cast %140 : vector<1x16x64xf32> to vector<16x64xf32>
    %142 = vector.shape_cast %138 : vector<16x64xf32> to vector<1x16x64xf32>
    tpu.vector_store %arg12[%139, %c0_68, %c0_69], %142 {strides = array<i32>} : memref<8x16x64xf32, #tpu.memory_space<vmem>>, vector<1x16x64xf32>,
    %c5_i32 = arith.constant 5 : i32
    %143 = arith.index_cast %c5_i32 : i32 to index
    %c0_70 = arith.constant 0 : index
    %c0_71 = arith.constant 0 : index
    %144 = vector.load %arg11[%143, %c0_70, %c0_71] : memref<8x16x64xf32, #tpu.memory_space<vmem>>, vector<1x16x64xf32>
    %145 = vector.shape_cast %144 : vector<1x16x64xf32> to vector<16x64xf32>
    %146 = arith.mulf %145, %138 : vector<16x64xf32>
    %147 = arith.index_cast %c5_i32 : i32 to index
    %c0_72 = arith.constant 0 : index
    %c0_73 = arith.constant 0 : index
    %148 = vector.load %arg12[%147, %c0_72, %c0_73] : memref<8x16x64xf32, #tpu.memory_space<vmem>>, vector<1x16x64xf32>
    %149 = vector.shape_cast %148 : vector<1x16x64xf32> to vector<16x64xf32>
    %150 = arith.addf %146, %149 : vector<16x64xf32>
    %151 = arith.index_cast %c5_i32 : i32 to index
    %c0_74 = arith.constant 0 : index
    %c0_75 = arith.constant 0 : index
    %152 = vector.load %arg12[%151, %c0_74, %c0_75] : memref<8x16x64xf32, #tpu.memory_space<vmem>>, vector<1x16x64xf32>
    %153 = vector.shape_cast %152 : vector<1x16x64xf32> to vector<16x64xf32>
    %154 = vector.shape_cast %150 : vector<16x64xf32> to vector<1x16x64xf32>
    tpu.vector_store %arg12[%151, %c0_74, %c0_75], %154 {strides = array<i32>} : memref<8x16x64xf32, #tpu.memory_space<vmem>>, vector<1x16x64xf32>,
    %c6_i32 = arith.constant 6 : i32
    %155 = arith.index_cast %c6_i32 : i32 to index
    %c0_76 = arith.constant 0 : index
    %c0_77 = arith.constant 0 : index
    %156 = vector.load %arg11[%155, %c0_76, %c0_77] : memref<8x16x64xf32, #tpu.memory_space<vmem>>, vector<1x16x64xf32>
    %157 = vector.shape_cast %156 : vector<1x16x64xf32> to vector<16x64xf32>
    %158 = arith.mulf %157, %150 : vector<16x64xf32>
    %159 = arith.index_cast %c6_i32 : i32 to index
    %c0_78 = arith.constant 0 : index
    %c0_79 = arith.constant 0 : index
    %160 = vector.load %arg12[%159, %c0_78, %c0_79] : memref<8x16x64xf32, #tpu.memory_space<vmem>>, vector<1x16x64xf32>
    %161 = vector.shape_cast %160 : vector<1x16x64xf32> to vector<16x64xf32>
    %162 = arith.addf %158, %161 : vector<16x64xf32>
    %163 = arith.index_cast %c6_i32 : i32 to index
    %c0_80 = arith.constant 0 : index
    %c0_81 = arith.constant 0 : index
    %164 = vector.load %arg12[%163, %c0_80, %c0_81] : memref<8x16x64xf32, #tpu.memory_space<vmem>>, vector<1x16x64xf32>
    %165 = vector.shape_cast %164 : vector<1x16x64xf32> to vector<16x64xf32>
    %166 = vector.shape_cast %162 : vector<16x64xf32> to vector<1x16x64xf32>
    tpu.vector_store %arg12[%163, %c0_80, %c0_81], %166 {strides = array<i32>} : memref<8x16x64xf32, #tpu.memory_space<vmem>>, vector<1x16x64xf32>,
    %c7_i32 = arith.constant 7 : i32
    %167 = arith.index_cast %c7_i32 : i32 to index
    %c0_82 = arith.constant 0 : index
    %c0_83 = arith.constant 0 : index
    %168 = vector.load %arg11[%167, %c0_82, %c0_83] : memref<8x16x64xf32, #tpu.memory_space<vmem>>, vector<1x16x64xf32>
    %169 = vector.shape_cast %168 : vector<1x16x64xf32> to vector<16x64xf32>
    %170 = arith.mulf %169, %162 : vector<16x64xf32>
    %171 = arith.index_cast %c7_i32 : i32 to index
    %c0_84 = arith.constant 0 : index
    %c0_85 = arith.constant 0 : index
    %172 = vector.load %arg12[%171, %c0_84, %c0_85] : memref<8x16x64xf32, #tpu.memory_space<vmem>>, vector<1x16x64xf32>
    %173 = vector.shape_cast %172 : vector<1x16x64xf32> to vector<16x64xf32>
    %174 = arith.addf %170, %173 : vector<16x64xf32>
    %175 = arith.index_cast %c7_i32 : i32 to index
    %c0_86 = arith.constant 0 : index
    %c0_87 = arith.constant 0 : index
    %176 = vector.load %arg12[%175, %c0_86, %c0_87] : memref<8x16x64xf32, #tpu.memory_space<vmem>>, vector<1x16x64xf32>
    %177 = vector.shape_cast %176 : vector<1x16x64xf32> to vector<16x64xf32>
    %178 = vector.shape_cast %174 : vector<16x64xf32> to vector<1x16x64xf32>
    tpu.vector_store %arg12[%175, %c0_86, %c0_87], %178 {strides = array<i32>} : memref<8x16x64xf32, #tpu.memory_space<vmem>>, vector<1x16x64xf32>,
    %c8_i32 = arith.constant 8 : i32
    %c0_88 = arith.constant 0 : index
    %c0_89 = arith.constant 0 : index
    %c0_90 = arith.constant 0 : index
    %179 = vector.load %arg12[%c0_88, %c0_89, %c0_90] : memref<8x16x64xf32, #tpu.memory_space<vmem>>, vector<8x16x64xf32>
    %180 = vector.shape_cast %63 : vector<8x16xf32> to vector<8x16x1xf32>
    %181 = vector.broadcast %180 : vector<8x16x1xf32> to vector<8x16x64xf32>
    %182 = arith.mulf %179, %181 : vector<8x16x64xf32>
    %cst_91 = arith.constant dense<0.000000e+00> : vector<8x64xf32>
    %183 = vector.multi_reduction <add>, %182, %cst_91 [1] : vector<8x16x64xf32> to vector<8x64xf32>
    %c0_92 = arith.constant 0 : index
    %c0_93 = arith.constant 0 : index
    %184 = vector.load %arg8[%c0_92, %c0_93] : memref<1x64xf32, #tpu.memory_space<vmem>>, vector<1x64xf32>
    %185 = vector.broadcast %184 : vector<1x64xf32> to vector<8x64xf32>
    %186 = arith.mulf %185, %48 : vector<8x64xf32>
    %187 = arith.addf %183, %186 : vector<8x64xf32>
    %cst_94 = arith.constant 0.000000e+00 : f32
    %188 = vector.broadcast %cst_94 : f32 to vector<8x64xf32>
    %189 = arith.subf %188, %5 : vector<8x64xf32>
    %190 = math.exp %189 : vector<8x64xf32>
    %cst_95 = arith.constant 1.000000e+00 : f32
    %191 = vector.broadcast %cst_95 : f32 to vector<8x64xf32>
    %192 = arith.addf %191, %190 : vector<8x64xf32>
    %cst_96 = arith.constant 1.000000e+00 : f32
    %193 = vector.broadcast %cst_96 : f32 to vector<8x64xf32>
    %194 = arith.divf %193, %192 : vector<8x64xf32>
    %195 = arith.mulf %5, %194 : vector<8x64xf32>
    %196 = arith.mulf %187, %195 : vector<8x64xf32>
    %c0_97 = arith.constant 0 : index
    %c0_98 = arith.constant 0 : index
    %197 = vector.load %arg9[%c0_97, %c0_98] : memref<64x32xf32, #tpu.memory_space<vmem>>, vector<64x32xf32>
    %cst_99 = arith.constant dense<0.000000e+00> : vector<8x32xf32>
    %198 = tpu.matmul %196, %197, %cst_99 {dimension_numbers = #tpu.dot_dimension_numbers<[1], [0], [0], [1], [0, 0, 1, 1], [], []>} : vector<8x64xf32>, vector<64x32xf32>, vector<8x32xf32> -> vector<8x32xf32>
    %c0_100 = arith.constant 0 : index
    %c0_101 = arith.constant 0 : index
    %c0_102 = arith.constant 0 : index
    %199 = vector.load %arg10[%c0_100, %c0_101, %c0_102] : memref<1x8x32xf32, #tpu.memory_space<vmem>>, vector<1x8x32xf32>
    %200 = vector.shape_cast %199 : vector<1x8x32xf32> to vector<8x32xf32>
    %201 = vector.shape_cast %198 : vector<8x32xf32> to vector<1x8x32xf32>
    tpu.vector_store %arg10[%c0_100, %c0_101, %c0_102], %201 {strides = array<i32>} : memref<1x8x32xf32, #tpu.memory_space<vmem>>, vector<1x8x32xf32>,
    return
  }
  func.func @transform_0(%arg0: i32) -> (i32, i32, i32) {
    %c0_i32 = arith.constant 0 : i32
    %c0_i32_0 = arith.constant 0 : i32
    %c0_i32_1 = arith.constant 0 : i32
    return %arg0, %c0_i32, %c0_i32_0 : i32, i32, i32
  }
  func.func @transform_1(%arg0: i32) -> (i32, i32) {
    %c0_i32 = arith.constant 0 : i32
    %c0_i32_0 = arith.constant 0 : i32
    %c0_i32_1 = arith.constant 0 : i32
    return %c0_i32, %c0_i32_0 : i32, i32
  }
  func.func @transform_2(%arg0: i32) -> (i32, i32) {
    %c0_i32 = arith.constant 0 : i32
    %c0_i32_0 = arith.constant 0 : i32
    %c0_i32_1 = arith.constant 0 : i32
    return %c0_i32, %c0_i32_0 : i32, i32
  }
  func.func @transform_3(%arg0: i32) -> (i32, i32) {
    %c0_i32 = arith.constant 0 : i32
    %c0_i32_0 = arith.constant 0 : i32
    %c0_i32_1 = arith.constant 0 : i32
    return %c0_i32, %c0_i32_0 : i32, i32
  }
  func.func @transform_4(%arg0: i32) -> (i32, i32) {
    %c0_i32 = arith.constant 0 : i32
    %c0_i32_0 = arith.constant 0 : i32
    %c0_i32_1 = arith.constant 0 : i32
    return %c0_i32, %c0_i32_0 : i32, i32
  }
  func.func @transform_5(%arg0: i32) -> (i32, i32) {
    %c0_i32 = arith.constant 0 : i32
    %c0_i32_0 = arith.constant 0 : i32
    %c0_i32_1 = arith.constant 0 : i32
    return %c0_i32, %c0_i32_0 : i32, i32
  }
  func.func @transform_6(%arg0: i32) -> (i32, i32) {
    %c0_i32 = arith.constant 0 : i32
    %c0_i32_0 = arith.constant 0 : i32
    %c0_i32_1 = arith.constant 0 : i32
    return %c0_i32, %c0_i32_0 : i32, i32
  }
  func.func @transform_7(%arg0: i32) -> (i32, i32) {
    %c0_i32 = arith.constant 0 : i32
    %c0_i32_0 = arith.constant 0 : i32
    %c0_i32_1 = arith.constant 0 : i32
    return %c0_i32, %c0_i32_0 : i32, i32
  }
  func.func @transform_8(%arg0: i32) -> (i32, i32) {
    %c0_i32 = arith.constant 0 : i32
    %c0_i32_0 = arith.constant 0 : i32
    %c0_i32_1 = arith.constant 0 : i32
    return %c0_i32, %c0_i32_0 : i32, i32
  }
  func.func @transform_9(%arg0: i32) -> (i32, i32, i32) {
    %c0_i32 = arith.constant 0 : i32
    %c0_i32_0 = arith.constant 0 : i32
    %c0_i32_1 = arith.constant 0 : i32
    return %arg0, %c0_i32, %c0_i32_0 : i32, i32, i32
  }
}

</mosaic_0001>

<llo_original>
// kernel: tpu_custom_call.1
$region0: #{tpu_custom_call.1}
  #allocation0 [shape = 'u32[]', space=smem, size = 0x4, offset = 0x4, fixed_abs, tag = 'smem constant byte address 0x4 - core index']
  #allocation1 [shape = 'u32[144,128]{1,0:T(1,128)}', space=vmem, size = 0x12000, scoped, tag = 'internal scratch']
  #allocation2 [shape = 'f32[8,16,64]{2,1,0:T(8,128)}', space=vmem, size = 0x10000, scoped, tag = 'scratch operand']
  #allocation3 [shape = 'f32[8,16,64]{2,1,0:T(8,128)}', space=vmem, size = 0x10000, scoped, tag = 'scratch operand']
  %s0 = inlined_call_operand.hbm [shape: f32[2,8,32], index: 0, kind: input, shape index: {}]
  %s1 = inlined_call_operand.vmem [shape: f32[32,128], index: 1, kind: input, shape index: {}]
  %s2 = inlined_call_operand.hbm [shape: f32[4,64], index: 2, kind: input, shape index: {}]
  %s3 = inlined_call_operand.vmem [shape: f32[1,64], index: 3, kind: input, shape index: {}]
  %s4 = inlined_call_operand.vmem [shape: f32[64,96], index: 4, kind: input, shape index: {}]
  %s5 = inlined_call_operand.vmem [shape: f32[1,64], index: 5, kind: input, shape index: {}]
  %s6 = inlined_call_operand.vmem [shape: f32[16,64], index: 6, kind: input, shape index: {}]
  %s7 = inlined_call_operand.vmem [shape: f32[1,64], index: 7, kind: input, shape index: {}]
  %s8 = inlined_call_operand.vmem [shape: f32[64,32], index: 8, kind: input, shape index: {}]
  %s9 = inlined_call_operand.hbm [shape: f32[2,8,32], index: 9, kind: output, shape index: {}]
  %s10 = sld [smem:[#allocation0]]
  $region77: #{tpu_custom_call.1} parent=0
    _
  %s12 = ssub.s32 1, %s10
  %s13 = scalar_select 0, %s12, %s10
  $region1: #{tpu_custom_call.1} parent=0
    #allocation4 [shape = 'u8[8192]{0}', space=vmem, size = 0x2000, scoped, tag = 'input window, operand 0']
    #allocation5 [shape = 's32[2]{0}', space=sflag, size = 0x8, scoped, tag = 'scoped memory for tpu_custom_call.1']
    #allocation6 [shape = 's32[2]{0}', space=sflag, size = 0x8, scoped, tag = 'scoped memory for tpu_custom_call.1']
    #allocation7 [shape = 'u8[2048]{0}', space=vmem, size = 0x800, scoped, tag = 'input window, operand 2, single buffered']
    #allocation8 [shape = 's32[1]{0}', space=sflag, size = 0x4, scoped, tag = 'scoped memory for tpu_custom_call.1']
    #allocation9 [shape = 'u8[8192]{0}', space=vmem, size = 0x2000, scoped, tag = 'output window, operand 0']
    %14 = vsyncpa [#allocation5], 0
    %s15 = scalar_lea.sflag [#allocation5], 1
    %16 = vsyncpa %s15, 0
    %17 = vsyncpa [#allocation8], 0
    %18 = vsyncpa [#allocation6], 0
    %s19 = scalar_lea.sflag [#allocation6], 1
    %20 = vsyncpa %s19, 0
    loop: start=0, step=1, limit=4
    $region2: #{tpu_custom_call.1} parent=1 // loop_pre_header
      _
    $region3: #{tpu_custom_call.1} parent=1 // loop_header
      %s22 = sphi 0, %s26
      %p23 = scmp.ge.s32.totalorder %s22, 4
      %s32 = sphi 0, %s34
      %s35 = sphi 0, %s32
      %s36 = sphi 0, %s35
      %s52 = sphi 0, %s36
      %s56 = sphi 0, %s56
      %s58 = sphi 0, %s56
      %s59 = sphi 0, %s58
      %s73 = sphi 0, %s59
      %s77 = sphi 0, %s77
      %s79 = sphi 0, %s77
      %s80 = sphi 0, %s79
      %s94 = sphi 0, %s80
      %s98 = sphi 0, %s98
      %s100 = sphi 0, %s98
      %s101 = sphi 0, %s100
      %s115 = sphi 0, %s101
      %s119 = sphi 0, %s119
      %s121 = sphi 0, %s119
      %s122 = sphi 0, %s121
      %s136 = sphi 0, %s122
      %s140 = sphi 0, %s140
      %s142 = sphi 0, %s140
      %s143 = sphi 0, %s142
      %s157 = sphi 0, %s143
      %s161 = sphi 0, %s161
      %s163 = sphi 0, %s161
      %s164 = sphi 0, %s163
      %s178 = sphi 0, %s164
      %s182 = sphi 0, %s182
      %s184 = sphi 0, %s182
      %s185 = sphi 0, %s184
      %s199 = sphi 0, %s185
      %s203 = sphi 0, %s203
      %s205 = sphi 0, %s203
      %s206 = sphi 0, %s205
      %s220 = sphi 0, %s206
      %s226 = sphi 0, %s228
      %s229 = sphi 0, %s226
      %s230 = sphi 0, %s229
      %s246 = sphi 0, %s230
    $region4: #{tpu_custom_call.1} parent=1 // loop_header_branch
      %25 = sbr.rel (%p23) target = $region8
    $region5: #{tpu_custom_call.1} parent=1 // loop_body
      %s27 = ssub.s32 %s22, 1
      %s28 = ssub.s32 %s22, 2
      %s29 = sadd.s32 %s22, 1
      %s30 = ssub.s32 %s22, %s29
      %p31 = scmp.eq.s32.totalorder %s30, 0
      %s33 = sadd.s32 %s32, 1
      %s34 = scalar_select %p31, %s32, %s33
      %p37 = pneg %p31
      %p38 = scmp.eq.s32.totalorder %s22, 1
      %p39 = por %p37, %p38
      %p40 = scmp.ne.s32.totalorder %s32, %s35
      %p41 = scmp.eq.s32.totalorder %s22, 0
      %p42 = por %p40, %p41
      %p43 = scmp.ne.s32.totalorder %s32, %s35
      %p44 = scmp.eq.s32.totalorder %s27, 1
      %p45 = por %p43, %p44
      %p46 = scmp.ne.s32.totalorder %s35, %s36
      %p47 = scmp.eq.s32.totalorder %s27, 0
      %p48 = por %p46, %p47
      %p49 = scmp.ne.s32.totalorder %s35, %s36
      %p50 = scmp.eq.s32.totalorder %s28, 1
      %p51 = por %p49, %p50
      %p53 = scmp.ne.s32.totalorder %s36, %s52
      %p54 = scmp.eq.s32.totalorder %s28, 0
      %p55 = por %p53, %p54
      %s57 = sadd.s32 %s56, 1
      %p60 = scmp.eq.s32.totalorder %s22, 1
      %p61 = scmp.ne.s32.totalorder %s56, %s58
      %p62 = scmp.eq.s32.totalorder %s22, 0
      %p63 = por %p61, %p62
      %p64 = scmp.ne.s32.totalorder %s56, %s58
      %p65 = scmp.eq.s32.totalorder %s27, 1
      %p66 = por %p64, %p65
      %p67 = scmp.ne.s32.totalorder %s58, %s59
      %p68 = scmp.eq.s32.totalorder %s27, 0
      %p69 = por %p67, %p68
      %p70 = scmp.ne.s32.totalorder %s58, %s59
      %p71 = scmp.eq.s32.totalorder %s28, 1
      %p72 = por %p70, %p71
      %p74 = scmp.ne.s32.totalorder %s59, %s73
      %p75 = scmp.eq.s32.totalorder %s28, 0
      %p76 = por %p74, %p75
      %s78 = sadd.s32 %s77, 1
      %p81 = scmp.eq.s32.totalorder %s22, 1
      %p82 = scmp.ne.s32.totalorder %s77, %s79
      %p83 = scmp.eq.s32.totalorder %s22, 0
      %p84 = por %p82, %p83
      %p85 = scmp.ne.s32.totalorder %s77, %s79
      %p86 = scmp.eq.s32.totalorder %s27, 1
      %p87 = por %p85, %p86
      %p88 = scmp.ne.s32.totalorder %s79, %s80
      %p89 = scmp.eq.s32.totalorder %s27, 0
      %p90 = por %p88, %p89
      %p91 = scmp.ne.s32.totalorder %s79, %s80
      %p92 = scmp.eq.s32.totalorder %s28, 1
      %p93 = por %p91, %p92
      %p95 = scmp.ne.s32.totalorder %s80, %s94
      %p96 = scmp.eq.s32.totalorder %s28, 0
      %p97 = por %p95, %p96
      %s99 = sadd.s32 %s98, 1
      %p102 = scmp.eq.s32.totalorder %s22, 1
      %p103 = scmp.ne.s32.totalorder %s98, %s100
      %p104 = scmp.eq.s32.totalorder %s22, 0
      %p105 = por %p103, %p104
      %p106 = scmp.ne.s32.totalorder %s98, %s100
      %p107 = scmp.eq.s32.totalorder %s27, 1
      %p108 = por %p106, %p107
      %p109 = scmp.ne.s32.totalorder %s100, %s101
      %p110 = scmp.eq.s32.totalorder %s27, 0
      %p111 = por %p109, %p110
      %p112 = scmp.ne.s32.totalorder %s100, %s101
      %p113 = scmp.eq.s32.totalorder %s28, 1
      %p114 = por %p112, %p113
      %p116 = scmp.ne.s32.totalorder %s101, %s115
      %p117 = scmp.eq.s32.totalorder %s28, 0
      %p118 = por %p116, %p117
      %s120 = sadd.s32 %s119, 1
      %p123 = scmp.eq.s32.totalorder %s22, 1
      %p124 = scmp.ne.s32.totalorder %s119, %s121
      %p125 = scmp.eq.s32.totalorder %s22, 0
      %p126 = por %p124, %p125
      %p127 = scmp.ne.s32.totalorder %s119, %s121
      %p128 = scmp.eq.s32.totalorder %s27, 1
      %p129 = por %p127, %p128
      %p130 = scmp.ne.s32.totalorder %s121, %s122
      %p131 = scmp.eq.s32.totalorder %s27, 0
      %p132 = por %p130, %p131
      %p133 = scmp.ne.s32.totalorder %s121, %s122
      %p134 = scmp.eq.s32.totalorder %s28, 1
      %p135 = por %p133, %p134
      %p137 = scmp.ne.s32.totalorder %s122, %s136
      %p138 = scmp.eq.s32.totalorder %s28, 0
      %p139 = por %p137, %p138
      %s141 = sadd.s32 %s140, 1
      %p144 = scmp.eq.s32.totalorder %s22, 1
      %p145 = scmp.ne.s32.totalorder %s140, %s142
      %p146 = scmp.eq.s32.totalorder %s22, 0
      %p147 = por %p145, %p146
      %p148 = scmp.ne.s32.totalorder %s140, %s142
      %p149 = scmp.eq.s32.totalorder %s27, 1
      %p150 = por %p148, %p149
      %p151 = scmp.ne.s32.totalorder %s142, %s143
      %p152 = scmp.eq.s32.totalorder %s27, 0
      %p153 = por %p151, %p152
      %p154 = scmp.ne.s32.totalorder %s142, %s143
      %p155 = scmp.eq.s32.totalorder %s28, 1
      %p156 = por %p154, %p155
      %p158 = scmp.ne.s32.totalorder %s143, %s157
      %p159 = scmp.eq.s32.totalorder %s28, 0
      %p160 = por %p158, %p159
      %s162 = sadd.s32 %s161, 1
      %p165 = scmp.eq.s32.totalorder %s22, 1
      %p166 = scmp.ne.s32.totalorder %s161, %s163
      %p167 = scmp.eq.s32.totalorder %s22, 0
      %p168 = por %p166, %p167
      %p169 = scmp.ne.s32.totalorder %s161, %s163
      %p170 = scmp.eq.s32.totalorder %s27, 1
      %p171 = por %p169, %p170
      %p172 = scmp.ne.s32.totalorder %s163, %s164
      %p173 = scmp.eq.s32.totalorder %s27, 0
      %p174 = por %p172, %p173
      %p175 = scmp.ne.s32.totalorder %s163, %s164
      %p176 = scmp.eq.s32.totalorder %s28, 1
      %p177 = por %p175, %p176
      %p179 = scmp.ne.s32.totalorder %s164, %s178
      %p180 = scmp.eq.s32.totalorder %s28, 0
      %p181 = por %p179, %p180
      %s183 = sadd.s32 %s182, 1
      %p186 = scmp.eq.s32.totalorder %s22, 1
      %p187 = scmp.ne.s32.totalorder %s182, %s184
      %p188 = scmp.eq.s32.totalorder %s22, 0
      %p189 = por %p187, %p188
      %p190 = scmp.ne.s32.totalorder %s182, %s184
      %p191 = scmp.eq.s32.totalorder %s27, 1
      %p192 = por %p190, %p191
      %p193 = scmp.ne.s32.totalorder %s184, %s185
      %p194 = scmp.eq.s32.totalorder %s27, 0
      %p195 = por %p193, %p194
      %p196 = scmp.ne.s32.totalorder %s184, %s185
      %p197 = scmp.eq.s32.totalorder %s28, 1
      %p198 = por %p196, %p197
      %p200 = scmp.ne.s32.totalorder %s185, %s199
      %p201 = scmp.eq.s32.totalorder %s28, 0
      %p202 = por %p200, %p201
      %s204 = sadd.s32 %s203, 1
      %p207 = scmp.eq.s32.totalorder %s22, 1
      %p208 = scmp.ne.s32.totalorder %s203, %s205
      %p209 = scmp.eq.s32.totalorder %s22, 0
      %p210 = por %p208, %p209
      %p211 = scmp.ne.s32.totalorder %s203, %s205
      %p212 = scmp.eq.s32.totalorder %s27, 1
      %p213 = por %p211, %p212
      %p214 = scmp.ne.s32.totalorder %s205, %s206
      %p215 = scmp.eq.s32.totalorder %s27, 0
      %p216 = por %p214, %p215
      %p217 = scmp.ne.s32.totalorder %s205, %s206
      %p218 = scmp.eq.s32.totalorder %s28, 1
      %p219 = por %p217, %p218
      %p221 = scmp.ne.s32.totalorder %s206, %s220
      %p222 = scmp.eq.s32.totalorder %s28, 0
      %p223 = por %p221, %p222
      %s224 = ssub.s32 %s22, %s29
      %p225 = scmp.eq.s32.totalorder %s224, 0
      %s227 = sadd.s32 %s226, 1
      %s228 = scalar_select %p225, %s226, %s227
      %p231 = pneg %p225
      %p232 = scmp.eq.s32.totalorder %s22, 1
      %p233 = por %p231, %p232
      %p234 = scmp.ne.s32.totalorder %s226, %s229
      %p235 = scmp.eq.s32.totalorder %s22, 0
      %p236 = por %p234, %p235
      %p237 = scmp.ne.s32.totalorder %s226, %s229
      %p238 = scmp.eq.s32.totalorder %s27, 1
      %p239 = por %p237, %p238
      %p240 = scmp.ne.s32.totalorder %s229, %s230
      %p241 = scmp.eq.s32.totalorder %s27, 0
      %p242 = por %p240, %p241
      %p243 = scmp.ne.s32.totalorder %s229, %s230
      %p244 = scmp.eq.s32.totalorder %s28, 1
      %p245 = por %p243, %p244
      %p247 = scmp.ne.s32.totalorder %s230, %s246
      %p248 = scmp.eq.s32.totalorder %s28, 0
      %p249 = por %p247, %p248
      %p250 = scmp.le.s32.totalorder 1, %s22
      %p251 = scmp.lt.s32.totalorder %s22, 3
      %p252 = pnand %p250, %p251
      %p253 = pneg %p252
      // Predicated region
      $region9: #{tpu_custom_call.1} parent=5 // pred_check
        _
      $region10: #{tpu_custom_call.1} parent=5 // pred_check_branch
        %255 = sbr.rel (%p252) target = $region12
      $region11: #{tpu_custom_call.1} parent=5 // pred_region
        %s256 = ssub.s32 %s22, 1
        // Predicated region
        $region13: #{tpu_custom_call.1} parent=11 // pred_check
          %p257 = pneg %p69
        $region14: #{tpu_custom_call.1} parent=11 // pred_check_branch
          %259 = sbr.rel (%p257) target = $region16
        $region15: #{tpu_custom_call.1} parent=11 // pred_region
          _
        $region16: #{tpu_custom_call.1} parent=11 // pred_fallthru
          _
        // Predicated region
        $region17: #{tpu_custom_call.1} parent=11 // pred_check
          %p260 = pneg %p90
        $region18: #{tpu_custom_call.1} parent=11 // pred_check_branch
          %262 = sbr.rel (%p260) target = $region20
        $region19: #{tpu_custom_call.1} parent=11 // pred_region
          %s264 = ssub.s32 64, 64
          %265 = vsyncadd [#allocation8], %s264
          %s267 = sshll.u32 [#allocation7], 4
          %s268 = int_to_ptr.vmem [resolvable:$true] %s267
          %270 = dma.hbm_to_vmem [thread:$0]  %s2, 64, %s268, [#allocation8]
        $region20: #{tpu_custom_call.1} parent=11 // pred_fallthru
          _
        // Predicated region
        $region21: #{tpu_custom_call.1} parent=11 // pred_check
          %p271 = pneg %p111
        $region22: #{tpu_custom_call.1} parent=11 // pred_check_branch
          %273 = sbr.rel (%p271) target = $region24
        $region23: #{tpu_custom_call.1} parent=11 // pred_region
          _
        $region24: #{tpu_custom_call.1} parent=11 // pred_fallthru
          _
        // Predicated region
        $region25: #{tpu_custom_call.1} parent=11 // pred_check
          %p274 = pneg %p132
        $region26: #{tpu_custom_call.1} parent=11 // pred_check_branch
          %276 = sbr.rel (%p274) target = $region28
        $region27: #{tpu_custom_call.1} parent=11 // pred_region
          _
        $region28: #{tpu_custom_call.1} parent=11 // pred_fallthru
          _
        // Predicated region
        $region29: #{tpu_custom_call.1} parent=11 // pred_check
          %p277 = pneg %p153
        $region30: #{tpu_custom_call.1} parent=11 // pred_check_branch
          %279 = sbr.rel (%p277) target = $region32
        $region31: #{tpu_custom_call.1} parent=11 // pred_region
          _
        $region32: #{tpu_custom_call.1} parent=11 // pred_fallthru
          _
        // Predicated region
        $region33: #{tpu_custom_call.1} parent=11 // pred_check
          %p280 = pneg %p174
        $region34: #{tpu_custom_call.1} parent=11 // pred_check_branch
          %282 = sbr.rel (%p280) target = $region36
        $region35: #{tpu_custom_call.1} parent=11 // pred_region
          _
        $region36: #{tpu_custom_call.1} parent=11 // pred_fallthru
          _
        // Predicated region
        $region37: #{tpu_custom_call.1} parent=11 // pred_check
          %p283 = pneg %p195
        $region38: #{tpu_custom_call.1} parent=11 // pred_check_branch
          %285 = sbr.rel (%p283) target = $region40
        $region39: #{tpu_custom_call.1} parent=11 // pred_region
          _
        $region40: #{tpu_custom_call.1} parent=11 // pred_fallthru
          _
        // Predicated region
        $region41: #{tpu_custom_call.1} parent=11 // pred_check
          %p286 = pneg %p216
        $region42: #{tpu_custom_call.1} parent=11 // pred_check_branch
          %288 = sbr.rel (%p286) target = $region44
        $region43: #{tpu_custom_call.1} parent=11 // pred_region
          _
        $region44: #{tpu_custom_call.1} parent=11 // pred_fallthru
          _
      $region12: #{tpu_custom_call.1} parent=5 // pred_fallthru
        _
      %p289 = scmp.lt.s32.totalorder %s22, 2
      // Predicated region
      $region45: #{tpu_custom_call.1} parent=5 // pred_check
        %p290 = pneg %p289
      $region46: #{tpu_custom_call.1} parent=5 // pred_check_branch
        %292 = sbr.rel (%p290) target = $region48
      $region47: #{tpu_custom_call.1} parent=5 // pred_region
        // Predicated region
        $region49: #{tpu_custom_call.1} parent=47 // pred_check
          %p293 = pneg %p42
        $region50: #{tpu_custom_call.1} parent=47 // pred_check_branch
          %295 = sbr.rel (%p293) target = $region52
        $region51: #{tpu_custom_call.1} parent=47 // pred_region
          %s296 = sand.u32 %s32, 1
          %s297 = scalar_lea.sflag [#allocation5], %s296
          %s298 = sand.u32 %s32, 1
          %s299 = smul.addr %s298, 8
          %s300 = scalar_lea.vmem [#allocation4], %s299
          %s302 = ssub.s32 128, 128
          %303 = vsyncadd %s297, %s302
          %s304 = smul.addr %s22, 128
          %s305 = scalar_lea.hbm %s0, %s304
          %s307 = sshll.u32 %s300, 4
          %s308 = int_to_ptr.vmem [resolvable:$true] %s307
          %310 = dma.hbm_to_vmem [thread:$0]  %s305, 128, %s308, %s297
        $region52: #{tpu_custom_call.1} parent=47 // pred_fallthru
          _
      $region48: #{tpu_custom_call.1} parent=5 // pred_fallthru
        _
      %p311 = scmp.le.s32.totalorder 1, %s22
      %p312 = scmp.lt.s32.totalorder %s22, 3
      %p313 = pnand %p311, %p312
      %p314 = pneg %p313
      // Predicated region
      $region53: #{tpu_custom_call.1} parent=5 // pred_check
        _
      $region54: #{tpu_custom_call.1} parent=5 // pred_check_branch
        %316 = sbr.rel (%p313) target = $region56
      $region55: #{tpu_custom_call.1} parent=5 // pred_region
        %s317 = ssub.s32 %s22, 1
        %s318 = sand.u32 %s35, 1
        %s319 = scalar_lea.sflag [#allocation5], %s318
        %s320 = sand.u32 %s35, 1
        %s321 = smul.addr %s320, 8
        %s322 = scalar_lea.vmem [#allocation4], %s321
        // Predicated region
        $region57: #{tpu_custom_call.1} parent=55 // pred_check
          %p323 = pneg %p48
        $region58: #{tpu_custom_call.1} parent=55 // pred_check_branch
          %325 = sbr.rel (%p323) target = $region60
        $region59: #{tpu_custom_call.1} parent=55 // pred_region
          %326 = dma.done %s319, 128
        $region60: #{tpu_custom_call.1} parent=55 // pred_fallthru
          _
        // Predicated region
        $region61: #{tpu_custom_call.1} parent=55 // pred_check
          %p327 = pneg %p90
        $region62: #{tpu_custom_call.1} parent=55 // pred_check_branch
          %329 = sbr.rel (%p327) target = $region64
        $region63: #{tpu_custom_call.1} parent=55 // pred_region
          %330 = dma.done [#allocation8], 64
        $region64: #{tpu_custom_call.1} parent=55 // pred_fallthru
          _
        %s331 = sand.u32 %s35, 1
        %s332 = scalar_lea.sflag [#allocation5], %s331
        %s333 = sand.u32 %s35, 1
        %s334 = smul.addr %s333, 8
        %s335 = scalar_lea.vmem [#allocation4], %s334
        %p336 = pneg %p48
        %p337 = pneg %p45
        %p338 = pneg %p69
        %p339 = pneg %p66
        %p340 = pneg %p90
        %p341 = pneg %p87
        %p342 = pneg %p111
        %p343 = pneg %p108
        %p344 = pneg %p132
        %p345 = pneg %p129
        %p346 = pneg %p153
        %p347 = pneg %p150
        %p348 = pneg %p174
        %p349 = pneg %p171
        %p350 = pneg %p195
        %p351 = pneg %p192
        %p352 = pneg %p216
        %p353 = pneg %p213
        %p354 = pneg %p242
        %p355 = pneg %p239
        %s356 = sand.u32 %s229, 1
        %s357 = scalar_lea.sflag [#allocation6], %s356
        %s358 = sand.u32 %s229, 1
        %s359 = smul.addr %s358, 8
        %s360 = scalar_lea.vmem [#allocation9], %s359
        %v361 = vld [vmem:[%s322] sm:$0xff]
        %v362 = vld [vmem:[%s1] sm:$0xff]
        %v363 = vld [vmem:[%s1 + $0x8] sm:$0xff]
        %v364 = vld [vmem:[%s1 + $0x10] sm:$0xff]
        %v365 = vld [vmem:[%s1 + $0x18] sm:$0xff]
        %vm366 = vcmask 261120
        %v368 = vsel %vm366, %v361, 0
        %370 = vmatprep.subr.mxu0 0.0
        %371 = vmatpush1.msra.mxu0 %v362
        %372 = vmatprep.subr.mxu0 0.0
        %373 = vmatpush1.msra.mxu0 %v363
        %374 = vmatprep.subr.mxu0 0.0
        %375 = vmatpush1.msra.mxu0 %v364
        %376 = vmatprep.subr.mxu0 0.0
        %377 = vmatpush1.msra.mxu0 %v365
        %378 = vmatprep.subr.mxu0 0.0
        %379 = vmatpush1.msra.mxu0 0.0
        %380 = vmatprep.subr.mxu0 0.0
        %381 = vmatpush1.msra.mxu0 0.0
        %382 = vmatprep.subr.mxu0 0.0
        %383 = vmatpush1.msra.mxu0 0.0
        %384 = vmatprep.subr.mxu0 0.0
        %385 = vmatpush1.msra.mxu0 0.0
        %386 = vmatprep.subr.mxu0 0.0
        %387 = vmatpush1.msra.mxu0 0.0
        %388 = vmatprep.subr.mxu0 0.0
        %389 = vmatpush1.msra.mxu0 0.0
        %390 = vmatprep.subr.mxu0 0.0
        %391 = vmatpush1.msra.mxu0 0.0
        %392 = vmatprep.subr.mxu0 0.0
        %393 = vmatpush1.msra.mxu0 0.0
        %394 = vmatprep.subr.mxu0 0.0
        %395 = vmatpush1.msra.mxu0 0.0
        %396 = vmatprep.subr.mxu0 0.0
        %397 = vmatpush1.msra.mxu0 0.0
        %398 = vmatprep.subr.mxu0 0.0
        %399 = vmatpush1.msra.mxu0 0.0
        %400 = vmatprep.subr.mxu0 0.0
        %401 = vmatpush1.msra.mxu0 0.0
        %402 = vmatprep.subr.mxu0 0.0
        %403 = vmatpush1.msra.mxu0 0.0
        %404 = vmatprep.subr.mxu0 0.0
        %405 = vmatpush1.msra.mxu0 0.0
        %406 = vmatprep.subr.mxu0 0.0
        %407 = vmatpush1.msra.mxu0 0.0
        %408 = vmatprep.subr.mxu0 0.0
        %409 = vmatpush1.msra.mxu0 0.0
        %410 = vmatprep.subr.mxu0 0.0
        %411 = vmatpush1.msra.mxu0 0.0
        %412 = vmatprep.subr.mxu0 0.0
        %413 = vmatpush1.msra.mxu0 0.0
        %414 = vmatprep.subr.mxu0 0.0
        %415 = vmatpush1.msra.mxu0 0.0
        %416 = vmatprep.subr.mxu0 0.0
        %417 = vmatpush1.msra.mxu0 0.0
        %418 = vmatprep.subr.mxu0 0.0
        %419 = vmatpush1.msra.mxu0 0.0
        %420 = vmatprep.subr.mxu0 0.0
        %421 = vmatpush1.msra.mxu0 0.0
        %422 = vmatprep.subr.mxu0 0.0
        %423 = vmatpush1.msra.mxu0 0.0
        %424 = vmatprep.subr.mxu0 0.0
        %425 = vmatpush1.msra.mxu0 0.0
        %426 = vmatprep.subr.mxu0 0.0
        %427 = vmatpush1.msra.mxu0 0.0
        %428 = vmatprep.subr.mxu0 0.0
        %429 = vmatpush1.msra.mxu0 0.0
        %430 = vmatprep.subr.mxu0 0.0
        %431 = vmatpush1.msra.mxu0 0.0
        %432 = vmatprep.subr.mxu0 0.0
        %433 = vmatpush1.msra.mxu0 0.0
        %434 = vmatprep.mubr.f32.mxu0 0.0
        %435 = vmatmul.mubr.f32.gmra.mrb[0].mxu0 %v368
        %v436 = vpop.f32.mrb[0].mxu0
        %v437 = vadd.f32 0.0, %v436
        %v438 = vpop.f32.mrb[0].mxu0
        %439 = vdwg.mxu0
        %v440 = vlaneseq
        %v441 = vshrl.u32 %v440, 7
        %v442 = vld [vmem:[%s3] sm:$0x1]
        %v444 = vlaneseq
        %v445 = vshrl.u32 %v444, 7
        %v446 = vsub.s32 0, %v445
        %v447 = vrot.slane %v442, %v446
        %v449 = vld [vmem:[#allocation7] sm:$0x1]
        %vm450 = vcmp.lt.s32.totalorder %v441, 3
        %v451 = vrot.slane %v437, 5
        %v452 = vsel %vm450, 0.0, %v451
        %v453 = vlaneseq
        %v454 = vshrl.u32 %v453, 7
        %v455 = vsub.s32 0, %v454
        %v456 = vrot.slane %v449, %v455
        %v457 = vmul.f32 %v452, %v456
        %v458 = vadd.f32 %v447, %v457
        %v459 = vld [vmem:[#allocation7 + $0x1] sm:$0x1]
        %vm460 = vcmp.lt.s32.totalorder %v441, 2
        %v461 = vrot.slane %v437, 6
        %v462 = vsel %vm460, 0.0, %v461
        %v463 = vlaneseq
        %v464 = vshrl.u32 %v463, 7
        %v465 = vsub.s32 0, %v464
        %v466 = vrot.slane %v459, %v465
        %v467 = vmul.f32 %v462, %v466
        %v468 = vadd.f32 %v458, %v467
        %v469 = vld [vmem:[#allocation7 + $0x2] sm:$0x1]
        %vm470 = vcmp.lt.s32.totalorder %v441, 1
        %v471 = vrot.slane %v437, 7
        %v472 = vsel %vm470, 0.0, %v471
        %v473 = vlaneseq
        %v474 = vshrl.u32 %v473, 7
        %v475 = vsub.s32 0, %v474
        %v476 = vrot.slane %v469, %v475
        %v477 = vmul.f32 %v472, %v476
        %v478 = vadd.f32 %v468, %v477
        %v479 = vld [vmem:[#allocation7 + $0x3] sm:$0x1]
        %v480 = vlaneseq
        %v481 = vshrl.u32 %v480, 7
        %v482 = vsub.s32 0, %v481
        %v483 = vrot.slane %v479, %v482
        %v484 = vmul.f32 %v437, %v483
        %v485 = vadd.f32 %v478, %v484
        %v486 = vsub.f32 0.0, %v485
        %v487 = vmul.f32 %v486, 1.442695
        %v488 = vpow.pop %v487
        %v489 = vadd.f32 %v488, 1.0
        %v490 = vrcp.pop %v489
        %v491 = vmul.f32 1.0, %v490
        %v492 = vmul.f32 %v485, %v491
        %v493 = vld [vmem:[%s4] sm:$0xff]
        %v494 = vld [vmem:[%s4 + $0x8] sm:$0xff]
        %v495 = vld [vmem:[%s4 + $0x10] sm:$0xff]
        %v496 = vld [vmem:[%s4 + $0x18] sm:$0xff]
        %v497 = vld [vmem:[%s4 + $0x20] sm:$0xff]
        %v498 = vld [vmem:[%s4 + $0x28] sm:$0xff]
        %v499 = vld [vmem:[%s4 + $0x30] sm:$0xff]
        %v500 = vld [vmem:[%s4 + $0x38] sm:$0xff]
        %vm501 = vcmask 523264
        %v503 = vsel %vm501, %v492, 0
        %505 = vmatprep.subr.mxu0 0.0
        %506 = vmatpush1.msra.mxu0 %v493
        %507 = vmatprep.subr.mxu0 0.0
        %508 = vmatpush1.msra.mxu0 %v494
        %509 = vmatprep.subr.mxu0 0.0
        %510 = vmatpush1.msra.mxu0 %v495
        %511 = vmatprep.subr.mxu0 0.0
        %512 = vmatpush1.msra.mxu0 %v496
        %513 = vmatprep.subr.mxu0 0.0
        %514 = vmatpush1.msra.mxu0 %v497
        %515 = vmatprep.subr.mxu0 0.0
        %516 = vmatpush1.msra.mxu0 %v498
        %517 = vmatprep.subr.mxu0 0.0
        %518 = vmatpush1.msra.mxu0 %v499
        %519 = vmatprep.subr.mxu0 0.0
        %520 = vmatpush1.msra.mxu0 %v500
        %521 = vmatprep.subr.mxu0 0.0
        %522 = vmatpush1.msra.mxu0 0.0
        %523 = vmatprep.subr.mxu0 0.0
        %524 = vmatpush1.msra.mxu0 0.0
        %525 = vmatprep.subr.mxu0 0.0
        %526 = vmatpush1.msra.mxu0 0.0
        %527 = vmatprep.subr.mxu0 0.0
        %528 = vmatpush1.msra.mxu0 0.0
        %529 = vmatprep.subr.mxu0 0.0
        %530 = vmatpush1.msra.mxu0 0.0
        %531 = vmatprep.subr.mxu0 0.0
        %532 = vmatpush1.msra.mxu0 0.0
        %533 = vmatprep.subr.mxu0 0.0
        %534 = vmatpush1.msra.mxu0 0.0
        %535 = vmatprep.subr.mxu0 0.0
        %536 = vmatpush1.msra.mxu0 0.0
        %537 = vmatprep.subr.mxu0 0.0
        %538 = vmatpush1.msra.mxu0 0.0
        %539 = vmatprep.subr.mxu0 0.0
        %540 = vmatpush1.msra.mxu0 0.0
        %541 = vmatprep.subr.mxu0 0.0
        %542 = vmatpush1.msra.mxu0 0.0
        %543 = vmatprep.subr.mxu0 0.0
        %544 = vmatpush1.msra.mxu0 0.0
        %545 = vmatprep.subr.mxu0 0.0
        %546 = vmatpush1.msra.mxu0 0.0
        %547 = vmatprep.subr.mxu0 0.0
        %548 = vmatpush1.msra.mxu0 0.0
        %549 = vmatprep.subr.mxu0 0.0
        %550 = vmatpush1.msra.mxu0 0.0
        %551 = vmatprep.subr.mxu0 0.0
        %552 = vmatpush1.msra.mxu0 0.0
        %553 = vmatprep.subr.mxu0 0.0
        %554 = vmatpush1.msra.mxu0 0.0
        %555 = vmatprep.subr.mxu0 0.0
        %556 = vmatpush1.msra.mxu0 0.0
        %557 = vmatprep.subr.mxu0 0.0
        %558 = vmatpush1.msra.mxu0 0.0
        %559 = vmatprep.subr.mxu0 0.0
        %560 = vmatpush1.msra.mxu0 0.0
        %561 = vmatprep.subr.mxu0 0.0
        %562 = vmatpush1.msra.mxu0 0.0
        %563 = vmatprep.subr.mxu0 0.0
        %564 = vmatpush1.msra.mxu0 0.0
        %565 = vmatprep.subr.mxu0 0.0
        %566 = vmatpush1.msra.mxu0 0.0
        %567 = vmatprep.subr.mxu0 0.0
        %568 = vmatpush1.msra.mxu0 0.0
        %569 = vmatprep.mubr.f32.mxu0 0.0
        %570 = vmatmul.mubr.f32.gmra.mrb[0].mxu0 %v503
        %v571 = vpop.f32.mrb[0].mxu0
        %v572 = vadd.f32 0.0, %v571
        %v573 = vpop.f32.mrb[0].mxu0
        %574 = vdwg.mxu0
        %v575 = vld [vmem:[%s5] sm:$0x1]
        %v577 = vlaneseq
        %v578 = vshrl.u32 %v577, 7
        %v579 = vsub.s32 0, %v578
        %v580 = vrot.slane %v575, %v579
        %v582 = vadd.f32 %v572, %v580
        %vm583 = vcmp.gt.f32.partialorder %v582, 20.0
        %v584 = vmin.f32 %v582, 20.0
        %v585 = vmul.f32 %v584, 1.442695
        %v586 = vpow.pop %v585
        %v587 = vadd.f32 %v586, 1.0
        %v588 = vlog2.pop %v587
        %v589 = vmul.f32 %v588, 0.6931472
        %v590 = vmul.f32 -0.5, %v586
        %v591 = vadd.f32 %v590, 1.0
        %v592 = vmul.f32 %v591, %v586
        %v593 = vand.u32 2147483647, %v586
        %vm594 = vcmp.lt.f32.partialorder %v593, 0.0004427343
        %v595 = vsel %vm594, %v592, %v589
        %v596 = vsel %vm583, %v582, %v595
        %v597 = vld [vmem:[%s6] sm:$0xff]
        %v598 = vld [vmem:[%s6 + $0x8] sm:$0xff]
        %v599 = vmul.f32 %v597, 1.442695
        %v600 = vpow.pop %v599
        %v601 = vmul.f32 %v598, 1.442695
        %v602 = vpow.pop %v601
        %v603 = vsub.f32 0.0, %v600
        %v604 = vsub.f32 0.0, %v602
        %v605 = vmul.f32 %v596, %v492
        %v607 = vcombine.high %v596, %v596
        %v609 = vunpack.c.l.s4 1966171168
        %v610 = vunpack.c.0.s8 %v609
        %v611 = vlaneseq
        %v612 = vshrl.u32 %v611, 7
        %v613 = vsub.s32 %v610, %v612
        %v614 = vrot.slane %v596, %v613
        %v616 = vunpack.c.l.s4 1966171168
        %v617 = vunpack.c.0.s8 %v616
        %v618 = vlaneseq
        %v619 = vshrl.u32 %v618, 7
        %v620 = vsub.s32 %v617, %v619
        %v621 = vrot.slane %v607, %v620
        %v622 = vcombine.high %v614, %v614
        %v623 = vcombine.high %v621, %v621
        %v625 = vunpack.c.l.s4 1966171168
        %v626 = vunpack.c.0.s8 %v625
        %v627 = vlaneseq
        %v628 = vshrl.u32 %v627, 7
        %v629 = vsub.s32 %v626, %v628
        %v630 = vrot.slane %v614, %v629
        %v632 = vunpack.c.l.s4 1966171168
        %v633 = vunpack.c.0.s8 %v632
        %v634 = vlaneseq
        %v635 = vshrl.u32 %v634, 7
        %v636 = vsub.s32 %v633, %v635
        %v637 = vrot.slane %v621, %v636
        %v639 = vunpack.c.l.s4 1966171168
        %v640 = vunpack.c.0.s8 %v639
        %v641 = vlaneseq
        %v642 = vshrl.u32 %v641, 7
        %v643 = vsub.s32 %v640, %v642
        %v644 = vrot.slane %v622, %v643
        %v646 = vunpack.c.l.s4 1966171168
        %v647 = vunpack.c.0.s8 %v646
        %v648 = vlaneseq
        %v649 = vshrl.u32 %v648, 7
        %v650 = vsub.s32 %v647, %v649
        %v651 = vrot.slane %v623, %v650
        %v652 = vcombine.high %v630, %v630
        %v653 = vcombine.high %v637, %v637
        %v654 = vcombine.high %v644, %v644
        %v655 = vcombine.high %v651, %v651
        %v656 = vlaneseq
        %v657 = vshrl.u32 %v656, 7
        %v658 = vsub.s32 0, %v657
        %v659 = vrot.slane %v630, %v658
        %v660 = vlaneseq
        %v661 = vshrl.u32 %v660, 7
        %v662 = vsub.s32 0, %v661
        %v663 = vrot.slane %v644, %v662
        %v664 = vlaneseq
        %v665 = vshrl.u32 %v664, 7
        %v666 = vsub.s32 0, %v665
        %v667 = vrot.slane %v652, %v666
        %v668 = vlaneseq
        %v669 = vshrl.u32 %v668, 7
        %v670 = vsub.s32 0, %v669
        %v671 = vrot.slane %v654, %v670
        %v672 = vlaneseq
        %v673 = vshrl.u32 %v672, 7
        %v674 = vsub.s32 0, %v673
        %v675 = vrot.slane %v637, %v674
        %v676 = vlaneseq
        %v677 = vshrl.u32 %v676, 7
        %v678 = vsub.s32 0, %v677
        %v679 = vrot.slane %v651, %v678
        %v680 = vlaneseq
        %v681 = vshrl.u32 %v680, 7
        %v682 = vsub.s32 0, %v681
        %v683 = vrot.slane %v653, %v682
        %v684 = vlaneseq
        %v685 = vshrl.u32 %v684, 7
        %v686 = vsub.s32 0, %v685
        %v687 = vrot.slane %v655, %v686
        %v696 = vmul.f32 %v659, %v603
        %v697 = vmul.f32 %v659, %v604
        %v698 = vmul.f32 %v663, %v603
        %v699 = vmul.f32 %v663, %v604
        %v700 = vmul.f32 %v667, %v603
        %v701 = vmul.f32 %v667, %v604
        %v702 = vmul.f32 %v671, %v603
        %v703 = vmul.f32 %v671, %v604
        %v704 = vmul.f32 %v675, %v603
        %v705 = vmul.f32 %v675, %v604
        %v706 = vmul.f32 %v679, %v603
        %v707 = vmul.f32 %v679, %v604
        %v708 = vmul.f32 %v683, %v603
        %v709 = vmul.f32 %v683, %v604
        %v710 = vmul.f32 %v687, %v603
        %v711 = vmul.f32 %v687, %v604
        %v712 = vmul.f32 %v696, 1.442695
        %v713 = vpow.pop %v712
        %v714 = vmul.f32 %v697, 1.442695
        %v715 = vpow.pop %v714
        %v716 = vmul.f32 %v698, 1.442695
        %v717 = vpow.pop %v716
        %v718 = vmul.f32 %v699, 1.442695
        %v719 = vpow.pop %v718
        %v720 = vmul.f32 %v700, 1.442695
        %v721 = vpow.pop %v720
        %v722 = vmul.f32 %v701, 1.442695
        %v723 = vpow.pop %v722
        %v724 = vmul.f32 %v702, 1.442695
        %v725 = vpow.pop %v724
        %v726 = vmul.f32 %v703, 1.442695
        %v727 = vpow.pop %v726
        %v728 = vmul.f32 %v704, 1.442695
        %v729 = vpow.pop %v728
        %v730 = vmul.f32 %v705, 1.442695
        %v731 = vpow.pop %v730
        %v732 = vmul.f32 %v706, 1.442695
        %v733 = vpow.pop %v732
        %v734 = vmul.f32 %v707, 1.442695
        %v735 = vpow.pop %v734
        %v736 = vmul.f32 %v708, 1.442695
        %v737 = vpow.pop %v736
        %v738 = vmul.f32 %v709, 1.442695
        %v739 = vpow.pop %v738
        %v740 = vmul.f32 %v710, 1.442695
        %v741 = vpow.pop %v740
        %v742 = vmul.f32 %v711, 1.442695
        %v743 = vpow.pop %v742
        %744 = vst.msk [vmem:[#allocation2] sm:$0xff] %vm501, %v713
        %745 = vst.msk [vmem:[#allocation2 + $0x8] sm:$0xff] %vm501, %v715
        %746 = vst.msk [vmem:[#allocation2 + $0x10] sm:$0xff] %vm501, %v717
        %747 = vst.msk [vmem:[#allocation2 + $0x18] sm:$0xff] %vm501, %v719
        %748 = vst.msk [vmem:[#allocation2 + $0x20] sm:$0xff] %vm501, %v721
        %749 = vst.msk [vmem:[#allocation2 + $0x28] sm:$0xff] %vm501, %v723
        %750 = vst.msk [vmem:[#allocation2 + $0x30] sm:$0xff] %vm501, %v725
        %751 = vst.msk [vmem:[#allocation2 + $0x38] sm:$0xff] %vm501, %v727
        %752 = vst.msk [vmem:[#allocation2 + $0x40] sm:$0xff] %vm501, %v729
        %753 = vst.msk [vmem:[#allocation2 + $0x48] sm:$0xff] %vm501, %v731
        %754 = vst.msk [vmem:[#allocation2 + $0x50] sm:$0xff] %vm501, %v733
        %755 = vst.msk [vmem:[#allocation2 + $0x58] sm:$0xff] %vm501, %v735
        %756 = vst.msk [vmem:[#allocation2 + $0x60] sm:$0xff] %vm501, %v737
        %757 = vst.msk [vmem:[#allocation2 + $0x68] sm:$0xff] %vm501, %v739
        %758 = vst.msk [vmem:[#allocation2 + $0x70] sm:$0xff] %vm501, %v741
        %759 = vst.msk [vmem:[#allocation2 + $0x78] sm:$0xff] %vm501, %v743
        %v761 = vcombine.high %v605, %v605
        %v763 = vunpack.c.l.s4 1966171168
        %v764 = vunpack.c.0.s8 %v763
        %v765 = vlaneseq
        %v766 = vshrl.u32 %v765, 7
        %v767 = vsub.s32 %v764, %v766
        %v768 = vrot.slane %v605, %v767
        %v770 = vunpack.c.l.s4 1966171168
        %v771 = vunpack.c.0.s8 %v770
        %v772 = vlaneseq
        %v773 = vshrl.u32 %v772, 7
        %v774 = vsub.s32 %v771, %v773
        %v775 = vrot.slane %v761, %v774
        %v776 = vcombine.high %v768, %v768
        %v777 = vcombine.high %v775, %v775
        %v779 = vunpack.c.l.s4 1966171168
        %v780 = vunpack.c.0.s8 %v779
        %v781 = vlaneseq
        %v782 = vshrl.u32 %v781, 7
        %v783 = vsub.s32 %v780, %v782
        %v784 = vrot.slane %v768, %v783
        %v786 = vunpack.c.l.s4 1966171168
        %v787 = vunpack.c.0.s8 %v786
        %v788 = vlaneseq
        %v789 = vshrl.u32 %v788, 7
        %v790 = vsub.s32 %v787, %v789
        %v791 = vrot.slane %v775, %v790
        %v793 = vunpack.c.l.s4 1966171168
        %v794 = vunpack.c.0.s8 %v793
        %v795 = vlaneseq
        %v796 = vshrl.u32 %v795, 7
        %v797 = vsub.s32 %v794, %v796
        %v798 = vrot.slane %v776, %v797
        %v800 = vunpack.c.l.s4 1966171168
        %v801 = vunpack.c.0.s8 %v800
        %v802 = vlaneseq
        %v803 = vshrl.u32 %v802, 7
        %v804 = vsub.s32 %v801, %v803
        %v805 = vrot.slane %v777, %v804
        %v806 = vcombine.high %v784, %v784
        %v807 = vcombine.high %v791, %v791
        %v808 = vcombine.high %v798, %v798
        %v809 = vcombine.high %v805, %v805
        %v810 = vlaneseq
        %v811 = vshrl.u32 %v810, 7
        %v812 = vsub.s32 0, %v811
        %v813 = vrot.slane %v572, %v812
        %s815 = sor.u32 256, 64
        %816 = vbcast.lane.b32.xlu0 %v813, %s815
        %v817 = vpop.permute.xlu0 %816
        %s819 = sor.u32 256, 72
        %820 = vbcast.lane.b32.xlu0 %v813, %s819
        %v821 = vpop.permute.xlu0 %820
        %v822 = vlaneseq
        %v823 = vshrl.u32 %v822, 7
        %v824 = vsub.s32 1, %v823
        %v825 = vrot.slane %v572, %v824
        %s827 = sor.u32 256, 64
        %828 = vbcast.lane.b32.xlu0 %v825, %s827
        %v829 = vpop.permute.xlu0 %828
        %s831 = sor.u32 256, 72
        %832 = vbcast.lane.b32.xlu0 %v825, %s831
        %v833 = vpop.permute.xlu0 %832
        %v834 = vlaneseq
        %v835 = vshrl.u32 %v834, 7
        %v836 = vsub.s32 2, %v835
        %v837 = vrot.slane %v572, %v836
        %s839 = sor.u32 256, 64
        %840 = vbcast.lane.b32.xlu0 %v837, %s839
        %v841 = vpop.permute.xlu0 %840
        %s843 = sor.u32 256, 72
        %844 = vbcast.lane.b32.xlu0 %v837, %s843
        %v845 = vpop.permute.xlu0 %844
        %v846 = vlaneseq
        %v847 = vshrl.u32 %v846, 7
        %v848 = vsub.s32 3, %v847
        %v849 = vrot.slane %v572, %v848
        %s851 = sor.u32 256, 64
        %852 = vbcast.lane.b32.xlu0 %v849, %s851
        %v853 = vpop.permute.xlu0 %852
        %s855 = sor.u32 256, 72
        %856 = vbcast.lane.b32.xlu0 %v849, %s855
        %v857 = vpop.permute.xlu0 %856
        %v858 = vlaneseq
        %v859 = vshrl.u32 %v858, 7
        %v860 = vsub.s32 4, %v859
        %v861 = vrot.slane %v572, %v860
        %s863 = sor.u32 256, 64
        %864 = vbcast.lane.b32.xlu0 %v861, %s863
        %v865 = vpop.permute.xlu0 %864
        %s867 = sor.u32 256, 72
        %868 = vbcast.lane.b32.xlu0 %v861, %s867
        %v869 = vpop.permute.xlu0 %868
        %v870 = vlaneseq
        %v871 = vshrl.u32 %v870, 7
        %v872 = vsub.s32 5, %v871
        %v873 = vrot.slane %v572, %v872
        %s875 = sor.u32 256, 64
        %876 = vbcast.lane.b32.xlu0 %v873, %s875
        %v877 = vpop.permute.xlu0 %876
        %s879 = sor.u32 256, 72
        %880 = vbcast.lane.b32.xlu0 %v873, %s879
        %v881 = vpop.permute.xlu0 %880
        %v882 = vlaneseq
        %v883 = vshrl.u32 %v882, 7
        %v884 = vsub.s32 6, %v883
        %v885 = vrot.slane %v572, %v884
        %s887 = sor.u32 256, 64
        %888 = vbcast.lane.b32.xlu0 %v885, %s887
        %v889 = vpop.permute.xlu0 %888
        %s891 = sor.u32 256, 72
        %892 = vbcast.lane.b32.xlu0 %v885, %s891
        %v893 = vpop.permute.xlu0 %892
        %v894 = vlaneseq
        %v895 = vshrl.u32 %v894, 7
        %v896 = vsub.s32 7, %v895
        %v897 = vrot.slane %v572, %v896
        %s899 = sor.u32 256, 64
        %900 = vbcast.lane.b32.xlu0 %v897, %s899
        %v901 = vpop.permute.xlu0 %900
        %s903 = sor.u32 256, 72
        %904 = vbcast.lane.b32.xlu0 %v897, %s903
        %v905 = vpop.permute.xlu0 %904
        %v906 = vlaneseq
        %v907 = vshrl.u32 %v906, 7
        %v908 = vsub.s32 0, %v907
        %v909 = vrot.slane %v784, %v908
        %v910 = vlaneseq
        %v911 = vshrl.u32 %v910, 7
        %v912 = vsub.s32 0, %v911
        %v913 = vrot.slane %v798, %v912
        %v914 = vlaneseq
        %v915 = vshrl.u32 %v914, 7
        %v916 = vsub.s32 0, %v915
        %v917 = vrot.slane %v806, %v916
        %v918 = vlaneseq
        %v919 = vshrl.u32 %v918, 7
        %v920 = vsub.s32 0, %v919
        %v921 = vrot.slane %v808, %v920
        %v922 = vlaneseq
        %v923 = vshrl.u32 %v922, 7
        %v924 = vsub.s32 0, %v923
        %v925 = vrot.slane %v791, %v924
        %v926 = vlaneseq
        %v927 = vshrl.u32 %v926, 7
        %v928 = vsub.s32 0, %v927
        %v929 = vrot.slane %v805, %v928
        %v930 = vlaneseq
        %v931 = vshrl.u32 %v930, 7
        %v932 = vsub.s32 0, %v931
        %v933 = vrot.slane %v807, %v932
        %v934 = vlaneseq
        %v935 = vshrl.u32 %v934, 7
        %v936 = vsub.s32 0, %v935
        %v937 = vrot.slane %v809, %v936
        %v946 = vmul.f32 %v909, %v817
        %v947 = vmul.f32 %v909, %v821
        %v948 = vmul.f32 %v913, %v829
        %v949 = vmul.f32 %v913, %v833
        %v950 = vmul.f32 %v917, %v841
        %v951 = vmul.f32 %v917, %v845
        %v952 = vmul.f32 %v921, %v853
        %v953 = vmul.f32 %v921, %v857
        %v954 = vmul.f32 %v925, %v865
        %v955 = vmul.f32 %v925, %v869
        %v956 = vmul.f32 %v929, %v877
        %v957 = vmul.f32 %v929, %v881
        %v958 = vmul.f32 %v933, %v889
        %v959 = vmul.f32 %v933, %v893
        %v960 = vmul.f32 %v937, %v901
        %v961 = vmul.f32 %v937, %v905
        %962 = vst.msk [vmem:[#allocation3] sm:$0xff] %vm501, %v946
        %963 = vst.msk [vmem:[#allocation3 + $0x8] sm:$0xff] %vm501, %v947
        %964 = vst.msk [vmem:[#allocation3 + $0x10] sm:$0xff] %vm501, %v948
        %965 = vst.msk [vmem:[#allocation3 + $0x18] sm:$0xff] %vm501, %v949
        %966 = vst.msk [vmem:[#allocation3 + $0x20] sm:$0xff] %vm501, %v950
        %967 = vst.msk [vmem:[#allocation3 + $0x28] sm:$0xff] %vm501, %v951
        %968 = vst.msk [vmem:[#allocation3 + $0x30] sm:$0xff] %vm501, %v952
        %969 = vst.msk [vmem:[#allocation3 + $0x38] sm:$0xff] %vm501, %v953
        %970 = vst.msk [vmem:[#allocation3 + $0x40] sm:$0xff] %vm501, %v954
        %971 = vst.msk [vmem:[#allocation3 + $0x48] sm:$0xff] %vm501, %v955
        %972 = vst.msk [vmem:[#allocation3 + $0x50] sm:$0xff] %vm501, %v956
        %973 = vst.msk [vmem:[#allocation3 + $0x58] sm:$0xff] %vm501, %v957
        %974 = vst.msk [vmem:[#allocation3 + $0x60] sm:$0xff] %vm501, %v958
        %975 = vst.msk [vmem:[#allocation3 + $0x68] sm:$0xff] %vm501, %v959
        %976 = vst.msk [vmem:[#allocation3 + $0x70] sm:$0xff] %vm501, %v960
        %977 = vst.msk [vmem:[#allocation3 + $0x78] sm:$0xff] %vm501, %v961
        %v978 = vld [vmem:[#allocation2] sm:$0xff]
        %v979 = vld [vmem:[#allocation2 + $0x8] sm:$0xff]
        %v980 = vmul.f32 %v978, 0.0
        %v981 = vmul.f32 %v979, 0.0
        %v982 = vld [vmem:[#allocation3] sm:$0xff]
        %v983 = vld [vmem:[#allocation3 + $0x8] sm:$0xff]
        %v984 = vadd.f32 %v980, %v982
        %v985 = vadd.f32 %v981, %v983
        %986 = vst.msk [vmem:[#allocation3] sm:$0xff] %vm501, %v984
        %987 = vst.msk [vmem:[#allocation3 + $0x8] sm:$0xff] %vm501, %v985
        %s988 = scalar_lea.vmem [#allocation2], 16
        %v989 = vld [vmem:[%s988] sm:$0xff]
        %v990 = vld [vmem:[%s988 + $0x8] sm:$0xff]
        %v991 = vmul.f32 %v989, %v984
        %v992 = vmul.f32 %v990, %v985
        %s993 = scalar_lea.vmem [#allocation3], 16
        %v994 = vld [vmem:[%s993] sm:$0xff]
        %v995 = vld [vmem:[%s993 + $0x8] sm:$0xff]
        %v996 = vadd.f32 %v991, %v994
        %v997 = vadd.f32 %v992, %v995
        %998 = vst.msk [vmem:[%s993] sm:$0xff] %vm501, %v996
        %999 = vst.msk [vmem:[%s993 + $0x8] sm:$0xff] %vm501, %v997
        %s1000 = scalar_lea.vmem [#allocation2], 32
        %v1001 = vld [vmem:[%s1000] sm:$0xff]
        %v1002 = vld [vmem:[%s1000 + $0x8] sm:$0xff]
        %v1003 = vmul.f32 %v1001, %v996
        %v1004 = vmul.f32 %v1002, %v997
        %s1005 = scalar_lea.vmem [#allocation3], 32
        %v1006 = vld [vmem:[%s1005] sm:$0xff]
        %v1007 = vld [vmem:[%s1005 + $0x8] sm:$0xff]
        %v1008 = vadd.f32 %v1003, %v1006
        %v1009 = vadd.f32 %v1004, %v1007
        %1010 = vst.msk [vmem:[%s1005] sm:$0xff] %vm501, %v1008
        %1011 = vst.msk [vmem:[%s1005 + $0x8] sm:$0xff] %vm501, %v1009
        %s1012 = scalar_lea.vmem [#allocation2], 48
        %v1013 = vld [vmem:[%s1012] sm:$0xff]
        %v1014 = vld [vmem:[%s1012 + $0x8] sm:$0xff]
        %v1015 = vmul.f32 %v1013, %v1008
        %v1016 = vmul.f32 %v1014, %v1009
        %s1017 = scalar_lea.vmem [#allocation3], 48
        %v1018 = vld [vmem:[%s1017] sm:$0xff]
        %v1019 = vld [vmem:[%s1017 + $0x8] sm:$0xff]
        %v1020 = vadd.f32 %v1015, %v1018
        %v1021 = vadd.f32 %v1016, %v1019
        %1022 = vst.msk [vmem:[%s1017] sm:$0xff] %vm501, %v1020
        %1023 = vst.msk [vmem:[%s1017 + $0x8] sm:$0xff] %vm501, %v1021
        %s1024 = scalar_lea.vmem [#allocation2], 64
        %v1025 = vld [vmem:[%s1024] sm:$0xff]
        %v1026 = vld [vmem:[%s1024 + $0x8] sm:$0xff]
        %v1027 = vmul.f32 %v1025, %v1020
        %v1028 = vmul.f32 %v1026, %v1021
        %s1029 = scalar_lea.vmem [#allocation3], 64
        %v1030 = vld [vmem:[%s1029] sm:$0xff]
        %v1031 = vld [vmem:[%s1029 + $0x8] sm:$0xff]
        %v1032 = vadd.f32 %v1027, %v1030
        %v1033 = vadd.f32 %v1028, %v1031
        %1034 = vst.msk [vmem:[%s1029] sm:$0xff] %vm501, %v1032
        %1035 = vst.msk [vmem:[%s1029 + $0x8] sm:$0xff] %vm501, %v1033
        %s1036 = scalar_lea.vmem [#allocation2], 80
        %v1037 = vld [vmem:[%s1036] sm:$0xff]
        %v1038 = vld [vmem:[%s1036 + $0x8] sm:$0xff]
        %v1039 = vmul.f32 %v1037, %v1032
        %v1040 = vmul.f32 %v1038, %v1033
        %s1041 = scalar_lea.vmem [#allocation3], 80
        %v1042 = vld [vmem:[%s1041] sm:$0xff]
        %v1043 = vld [vmem:[%s1041 + $0x8] sm:$0xff]
        %v1044 = vadd.f32 %v1039, %v1042
        %v1045 = vadd.f32 %v1040, %v1043
        %1046 = vst.msk [vmem:[%s1041] sm:$0xff] %vm501, %v1044
        %1047 = vst.msk [vmem:[%s1041 + $0x8] sm:$0xff] %vm501, %v1045
        %s1048 = scalar_lea.vmem [#allocation2], 96
        %v1049 = vld [vmem:[%s1048] sm:$0xff]
        %v1050 = vld [vmem:[%s1048 + $0x8] sm:$0xff]
        %v1051 = vmul.f32 %v1049, %v1044
        %v1052 = vmul.f32 %v1050, %v1045
        %s1053 = scalar_lea.vmem [#allocation3], 96
        %v1054 = vld [vmem:[%s1053] sm:$0xff]
        %v1055 = vld [vmem:[%s1053 + $0x8] sm:$0xff]
        %v1056 = vadd.f32 %v1051, %v1054
        %v1057 = vadd.f32 %v1052, %v1055
        %1058 = vst.msk [vmem:[%s1053] sm:$0xff] %vm501, %v1056
        %1059 = vst.msk [vmem:[%s1053 + $0x8] sm:$0xff] %vm501, %v1057
        %s1060 = scalar_lea.vmem [#allocation2], 112
        %v1061 = vld [vmem:[%s1060] sm:$0xff]
        %v1062 = vld [vmem:[%s1060 + $0x8] sm:$0xff]
        %v1063 = vmul.f32 %v1061, %v1056
        %v1064 = vmul.f32 %v1062, %v1057
        %s1065 = scalar_lea.vmem [#allocation3], 112
        %v1066 = vld [vmem:[%s1065] sm:$0xff]
        %v1067 = vld [vmem:[%s1065 + $0x8] sm:$0xff]
        %v1068 = vadd.f32 %v1063, %v1066
        %v1069 = vadd.f32 %v1064, %v1067
        %1070 = vst.msk [vmem:[%s1065] sm:$0xff] %vm501, %v1068
        %1071 = vst.msk [vmem:[%s1065 + $0x8] sm:$0xff] %vm501, %v1069
        %v1072 = vld [vmem:[#allocation3] sm:$0xff]
        %v1073 = vld [vmem:[#allocation3 + $0x8] sm:$0xff]
        %v1074 = vld [vmem:[#allocation3 + $0x10] sm:$0xff]
        %v1075 = vld [vmem:[#allocation3 + $0x18] sm:$0xff]
        %v1076 = vld [vmem:[#allocation3 + $0x20] sm:$0xff]
        %v1077 = vld [vmem:[#allocation3 + $0x28] sm:$0xff]
        %v1078 = vld [vmem:[#allocation3 + $0x30] sm:$0xff]
        %v1079 = vld [vmem:[#allocation3 + $0x38] sm:$0xff]
        %v1080 = vld [vmem:[#allocation3 + $0x40] sm:$0xff]
        %v1081 = vld [vmem:[#allocation3 + $0x48] sm:$0xff]
        %v1082 = vld [vmem:[#allocation3 + $0x50] sm:$0xff]
        %v1083 = vld [vmem:[#allocation3 + $0x58] sm:$0xff]
        %v1084 = vld [vmem:[#allocation3 + $0x60] sm:$0xff]
        %v1085 = vld [vmem:[#allocation3 + $0x68] sm:$0xff]
        %v1086 = vld [vmem:[#allocation3 + $0x70] sm:$0xff]
        %v1087 = vld [vmem:[#allocation3 + $0x78] sm:$0xff]
        %s1089 = sor.u32 256, 80
        %1090 = vbcast.lane.b32.xlu0 %v813, %s1089
        %v1091 = vpop.permute.xlu0 %1090
        %s1093 = sor.u32 256, 88
        %1094 = vbcast.lane.b32.xlu0 %v813, %s1093
        %v1095 = vpop.permute.xlu0 %1094
        %s1097 = sor.u32 256, 80
        %1098 = vbcast.lane.b32.xlu0 %v825, %s1097
        %v1099 = vpop.permute.xlu0 %1098
        %s1101 = sor.u32 256, 88
        %1102 = vbcast.lane.b32.xlu0 %v825, %s1101
        %v1103 = vpop.permute.xlu0 %1102
        %s1105 = sor.u32 256, 80
        %1106 = vbcast.lane.b32.xlu0 %v837, %s1105
        %v1107 = vpop.permute.xlu0 %1106
        %s1109 = sor.u32 256, 88
        %1110 = vbcast.lane.b32.xlu0 %v837, %s1109
        %v1111 = vpop.permute.xlu0 %1110
        %s1113 = sor.u32 256, 80
        %1114 = vbcast.lane.b32.xlu0 %v849, %s1113
        %v1115 = vpop.permute.xlu0 %1114
        %s1117 = sor.u32 256, 88
        %1118 = vbcast.lane.b32.xlu0 %v849, %s1117
        %v1119 = vpop.permute.xlu0 %1118
        %s1121 = sor.u32 256, 80
        %1122 = vbcast.lane.b32.xlu0 %v861, %s1121
        %v1123 = vpop.permute.xlu0 %1122
        %s1125 = sor.u32 256, 88
        %1126 = vbcast.lane.b32.xlu0 %v861, %s1125
        %v1127 = vpop.permute.xlu0 %1126
        %s1129 = sor.u32 256, 80
        %1130 = vbcast.lane.b32.xlu0 %v873, %s1129
        %v1131 = vpop.permute.xlu0 %1130
        %s1133 = sor.u32 256, 88
        %1134 = vbcast.lane.b32.xlu0 %v873, %s1133
        %v1135 = vpop.permute.xlu0 %1134
        %s1137 = sor.u32 256, 80
        %1138 = vbcast.lane.b32.xlu0 %v885, %s1137
        %v1139 = vpop.permute.xlu0 %1138
        %s1141 = sor.u32 256, 88
        %1142 = vbcast.lane.b32.xlu0 %v885, %s1141
        %v1143 = vpop.permute.xlu0 %1142
        %s1145 = sor.u32 256, 80
        %1146 = vbcast.lane.b32.xlu0 %v897, %s1145
        %v1147 = vpop.permute.xlu0 %1146
        %s1149 = sor.u32 256, 88
        %1150 = vbcast.lane.b32.xlu0 %v897, %s1149
        %v1151 = vpop.permute.xlu0 %1150
        %v1152 = vmul.f32 %v1072, %v1091
        %v1153 = vmul.f32 %v1073, %v1095
        %v1154 = vmul.f32 %v1074, %v1099
        %v1155 = vmul.f32 %v1075, %v1103
        %v1156 = vmul.f32 %v1076, %v1107
        %v1157 = vmul.f32 %v1077, %v1111
        %v1158 = vmul.f32 %v1078, %v1115
        %v1159 = vmul.f32 %v1079, %v1119
        %v1160 = vmul.f32 %v1080, %v1123
        %v1161 = vmul.f32 %v1081, %v1127
        %v1162 = vmul.f32 %v1082, %v1131
        %v1163 = vmul.f32 %v1083, %v1135
        %v1164 = vmul.f32 %v1084, %v1139
        %v1165 = vmul.f32 %v1085, %v1143
        %v1166 = vmul.f32 %v1086, %v1147
        %v1167 = vmul.f32 %v1087, %v1151
        %v1168 = vsel %vm501, %v1152, 0.0
        %v1169 = vsel %vm501, %v1153, 0.0
        %v1170 = vadd.f32 %v1168, %v1169
        %v1171 = vrot.slane %v1170, 4
        %v1172 = vadd.f32 %v1170, %v1171
        %v1173 = vrot.slane %v1172, 2
        %v1174 = vadd.f32 %v1172, %v1173
        %v1175 = vrot.slane %v1174, 1
        %v1176 = vadd.f32 %v1174, %v1175
        %v1177 = vsel %vm501, %v1154, 0.0
        %v1178 = vsel %vm501, %v1155, 0.0
        %v1179 = vadd.f32 %v1177, %v1178
        %v1180 = vrot.slane %v1179, 4
        %v1181 = vadd.f32 %v1179, %v1180
        %v1182 = vrot.slane %v1181, 2
        %v1183 = vadd.f32 %v1181, %v1182
        %v1184 = vrot.slane %v1183, 1
        %v1185 = vadd.f32 %v1183, %v1184
        %v1186 = vsel %vm501, %v1156, 0.0
        %v1187 = vsel %vm501, %v1157, 0.0
        %v1188 = vadd.f32 %v1186, %v1187
        %v1189 = vrot.slane %v1188, 4
        %v1190 = vadd.f32 %v1188, %v1189
        %v1191 = vrot.slane %v1190, 2
        %v1192 = vadd.f32 %v1190, %v1191
        %v1193 = vrot.slane %v1192, 1
        %v1194 = vadd.f32 %v1192, %v1193
        %v1195 = vsel %vm501, %v1158, 0.0
        %v1196 = vsel %vm501, %v1159, 0.0
        %v1197 = vadd.f32 %v1195, %v1196
        %v1198 = vrot.slane %v1197, 4
        %v1199 = vadd.f32 %v1197, %v1198
        %v1200 = vrot.slane %v1199, 2
        %v1201 = vadd.f32 %v1199, %v1200
        %v1202 = vrot.slane %v1201, 1
        %v1203 = vadd.f32 %v1201, %v1202
        %v1204 = vsel %vm501, %v1160, 0.0
        %v1205 = vsel %vm501, %v1161, 0.0
        %v1206 = vadd.f32 %v1204, %v1205
        %v1207 = vrot.slane %v1206, 4
        %v1208 = vadd.f32 %v1206, %v1207
        %v1209 = vrot.slane %v1208, 2
        %v1210 = vadd.f32 %v1208, %v1209
        %v1211 = vrot.slane %v1210, 1
        %v1212 = vadd.f32 %v1210, %v1211
        %v1213 = vsel %vm501, %v1162, 0.0
        %v1214 = vsel %vm501, %v1163, 0.0
        %v1215 = vadd.f32 %v1213, %v1214
        %v1216 = vrot.slane %v1215, 4
        %v1217 = vadd.f32 %v1215, %v1216
        %v1218 = vrot.slane %v1217, 2
        %v1219 = vadd.f32 %v1217, %v1218
        %v1220 = vrot.slane %v1219, 1
        %v1221 = vadd.f32 %v1219, %v1220
        %v1222 = vsel %vm501, %v1164, 0.0
        %v1223 = vsel %vm501, %v1165, 0.0
        %v1224 = vadd.f32 %v1222, %v1223
        %v1225 = vrot.slane %v1224, 4
        %v1226 = vadd.f32 %v1224, %v1225
        %v1227 = vrot.slane %v1226, 2
        %v1228 = vadd.f32 %v1226, %v1227
        %v1229 = vrot.slane %v1228, 1
        %v1230 = vadd.f32 %v1228, %v1229
        %v1231 = vsel %vm501, %v1166, 0.0
        %v1232 = vsel %vm501, %v1167, 0.0
        %v1233 = vadd.f32 %v1231, %v1232
        %v1234 = vrot.slane %v1233, 4
        %v1235 = vadd.f32 %v1233, %v1234
        %v1236 = vrot.slane %v1235, 2
        %v1237 = vadd.f32 %v1235, %v1236
        %v1238 = vrot.slane %v1237, 1
        %v1239 = vadd.f32 %v1237, %v1238
        %v1240 = vld [vmem:[%s7] sm:$0x1]
        %v1242 = vlaneseq
        %v1243 = vshrl.u32 %v1242, 7
        %v1244 = vsub.s32 0, %v1243
        %v1245 = vrot.slane %v1240, %v1244
        %v1247 = vmul.f32 %v1245, %v492
        %v1249 = vrot.slane %v1247, 1
        %v1250 = vrot.slane %v1247, 2
        %v1251 = vrot.slane %v1247, 3
        %v1252 = vrot.slane %v1247, 4
        %v1253 = vrot.slane %v1247, 5
        %v1254 = vrot.slane %v1247, 6
        %v1255 = vrot.slane %v1247, 7
        %v1264 = vadd.f32 %v1176, %v1247
        %v1265 = vadd.f32 %v1185, %v1249
        %v1266 = vadd.f32 %v1194, %v1250
        %v1267 = vadd.f32 %v1203, %v1251
        %v1268 = vadd.f32 %v1212, %v1252
        %v1269 = vadd.f32 %v1221, %v1253
        %v1270 = vadd.f32 %v1230, %v1254
        %v1271 = vadd.f32 %v1239, %v1255
        %v1272 = vsub.f32 0.0, %v437
        %v1273 = vmul.f32 %v1272, 1.442695
        %v1274 = vpow.pop %v1273
        %v1275 = vadd.f32 %v1274, 1.0
        %v1276 = vrcp.pop %v1275
        %v1277 = vmul.f32 1.0, %v1276
        %v1278 = vmul.f32 %v437, %v1277
        %v1280 = vrot.slane %v1278, 1
        %v1281 = vrot.slane %v1278, 2
        %v1282 = vrot.slane %v1278, 3
        %v1283 = vrot.slane %v1278, 4
        %v1284 = vrot.slane %v1278, 5
        %v1285 = vrot.slane %v1278, 6
        %v1286 = vrot.slane %v1278, 7
        %1287 = vrot.lane.b32.xlu0 %v1278, 64
        %v1288 = vpop.permute.xlu0 %1287
        %1289 = vrot.lane.b32.xlu0 %v1280, 64
        %v1290 = vpop.permute.xlu0 %1289
        %1291 = vrot.lane.b32.xlu0 %v1281, 64
        %v1292 = vpop.permute.xlu0 %1291
        %1293 = vrot.lane.b32.xlu0 %v1282, 64
        %v1294 = vpop.permute.xlu0 %1293
        %1295 = vrot.lane.b32.xlu0 %v1283, 64
        %v1296 = vpop.permute.xlu0 %1295
        %1297 = vrot.lane.b32.xlu0 %v1284, 64
        %v1298 = vpop.permute.xlu0 %1297
        %1299 = vrot.lane.b32.xlu0 %v1285, 64
        %v1300 = vpop.permute.xlu0 %1299
        %1301 = vrot.lane.b32.xlu0 %v1286, 64
        %v1302 = vpop.permute.xlu0 %1301
        %v1311 = vmul.f32 %v1264, %v1288
        %v1312 = vmul.f32 %v1265, %v1290
        %v1313 = vmul.f32 %v1266, %v1292
        %v1314 = vmul.f32 %v1267, %v1294
        %v1315 = vmul.f32 %v1268, %v1296
        %v1316 = vmul.f32 %v1269, %v1298
        %v1317 = vmul.f32 %v1270, %v1300
        %v1318 = vmul.f32 %v1271, %v1302
        %v1319 = vld [vmem:[%s8] sm:$0xff]
        %v1320 = vld [vmem:[%s8 + $0x8] sm:$0xff]
        %v1321 = vld [vmem:[%s8 + $0x10] sm:$0xff]
        %v1322 = vld [vmem:[%s8 + $0x18] sm:$0xff]
        %v1323 = vld [vmem:[%s8 + $0x20] sm:$0xff]
        %v1324 = vld [vmem:[%s8 + $0x28] sm:$0xff]
        %v1325 = vld [vmem:[%s8 + $0x30] sm:$0xff]
        %v1326 = vld [vmem:[%s8 + $0x38] sm:$0xff]
        %v1335 = vrot.slane %v1312, 7
        %vm1336 = vcmask 1041409
        %v1337 = vsel %vm1336, %v1335, %v1311
        %v1338 = vrot.slane %v1313, 6
        %vm1339 = vcmask 1042434
        %v1340 = vsel %vm1339, %v1338, %v1337
        %v1341 = vrot.slane %v1314, 5
        %vm1342 = vcmask 1043459
        %v1343 = vsel %vm1342, %v1341, %v1340
        %v1344 = vrot.slane %v1315, 4
        %vm1345 = vcmask 1044484
        %v1346 = vsel %vm1345, %v1344, %v1343
        %v1347 = vrot.slane %v1316, 3
        %vm1348 = vcmask 1045509
        %v1349 = vsel %vm1348, %v1347, %v1346
        %v1350 = vrot.slane %v1317, 2
        %vm1351 = vcmask 1046534
        %v1352 = vsel %vm1351, %v1350, %v1349
        %v1353 = vrot.slane %v1318, 1
        %vm1354 = vcmask 1047559
        %v1355 = vsel %vm1354, %v1353, %v1352
        %v1356 = vsel %vm501, %v1355, 0
        %1358 = vmatprep.subr.mxu0 0.0
        %1359 = vmatpush1.msra.mxu0 %v1319
        %1360 = vmatprep.subr.mxu0 0.0
        %1361 = vmatpush1.msra.mxu0 %v1320
        %1362 = vmatprep.subr.mxu0 0.0
        %1363 = vmatpush1.msra.mxu0 %v1321
        %1364 = vmatprep.subr.mxu0 0.0
        %1365 = vmatpush1.msra.mxu0 %v1322
        %1366 = vmatprep.subr.mxu0 0.0
        %1367 = vmatpush1.msra.mxu0 %v1323
        %1368 = vmatprep.subr.mxu0 0.0
        %1369 = vmatpush1.msra.mxu0 %v1324
        %1370 = vmatprep.subr.mxu0 0.0
        %1371 = vmatpush1.msra.mxu0 %v1325
        %1372 = vmatprep.subr.mxu0 0.0
        %1373 = vmatpush1.msra.mxu0 %v1326
        %1374 = vmatprep.subr.mxu0 0.0
        %1375 = vmatpush1.msra.mxu0 0.0
        %1376 = vmatprep.subr.mxu0 0.0
        %1377 = vmatpush1.msra.mxu0 0.0
        %1378 = vmatprep.subr.mxu0 0.0
        %1379 = vmatpush1.msra.mxu0 0.0
        %1380 = vmatprep.subr.mxu0 0.0
        %1381 = vmatpush1.msra.mxu0 0.0
        %1382 = vmatprep.subr.mxu0 0.0
        %1383 = vmatpush1.msra.mxu0 0.0
        %1384 = vmatprep.subr.mxu0 0.0
        %1385 = vmatpush1.msra.mxu0 0.0
        %1386 = vmatprep.subr.mxu0 0.0
        %1387 = vmatpush1.msra.mxu0 0.0
        %1388 = vmatprep.subr.mxu0 0.0
        %1389 = vmatpush1.msra.mxu0 0.0
        %1390 = vmatprep.subr.mxu0 0.0
        %1391 = vmatpush1.msra.mxu0 0.0
        %1392 = vmatprep.subr.mxu0 0.0
        %1393 = vmatpush1.msra.mxu0 0.0
        %1394 = vmatprep.subr.mxu0 0.0
        %1395 = vmatpush1.msra.mxu0 0.0
        %1396 = vmatprep.subr.mxu0 0.0
        %1397 = vmatpush1.msra.mxu0 0.0
        %1398 = vmatprep.subr.mxu0 0.0
        %1399 = vmatpush1.msra.mxu0 0.0
        %1400 = vmatprep.subr.mxu0 0.0
        %1401 = vmatpush1.msra.mxu0 0.0
        %1402 = vmatprep.subr.mxu0 0.0
        %1403 = vmatpush1.msra.mxu0 0.0
        %1404 = vmatprep.subr.mxu0 0.0
        %1405 = vmatpush1.msra.mxu0 0.0
        %1406 = vmatprep.subr.mxu0 0.0
        %1407 = vmatpush1.msra.mxu0 0.0
        %1408 = vmatprep.subr.mxu0 0.0
        %1409 = vmatpush1.msra.mxu0 0.0
        %1410 = vmatprep.subr.mxu0 0.0
        %1411 = vmatpush1.msra.mxu0 0.0
        %1412 = vmatprep.subr.mxu0 0.0
        %1413 = vmatpush1.msra.mxu0 0.0
        %1414 = vmatprep.subr.mxu0 0.0
        %1415 = vmatpush1.msra.mxu0 0.0
        %1416 = vmatprep.subr.mxu0 0.0
        %1417 = vmatpush1.msra.mxu0 0.0
        %1418 = vmatprep.subr.mxu0 0.0
        %1419 = vmatpush1.msra.mxu0 0.0
        %1420 = vmatprep.subr.mxu0 0.0
        %1421 = vmatpush1.msra.mxu0 0.0
        %1422 = vmatprep.mubr.f32.mxu0 0.0
        %1423 = vmatmul.mubr.f32.gmra.mrb[0].mxu0 %v1356
        %v1424 = vpop.f32.mrb[0].mxu0
        %v1425 = vadd.f32 0.0, %v1424
        %v1426 = vpop.f32.mrb[0].mxu0
        %1427 = vdwg.mxu0
        %1428 = vst.msk [vmem:[%s360] sm:$0xff] %vm366, %v1425
        %s1429 = sand.u32 %s229, 1
        %s1430 = scalar_lea.sflag [#allocation6], %s1429
        %s1431 = sand.u32 %s229, 1
        %s1432 = smul.addr %s1431, 8
        %s1433 = scalar_lea.vmem [#allocation9], %s1432
        // Predicated region
        $region65: #{tpu_custom_call.1} parent=55 // pred_check
          %p1434 = pneg %p239
        $region66: #{tpu_custom_call.1} parent=55 // pred_check_branch
          %1436 = sbr.rel (%p1434) target = $region68
        $region67: #{tpu_custom_call.1} parent=55 // pred_region
          %s1438 = ssub.s32 128, 128
          %1439 = vsyncadd %s1430, %s1438
          %s1440 = smul.addr %s27, 128
          %s1441 = scalar_lea.hbm %s9, %s1440
          %s1443 = sshll.u32 %s1433, 4
          %s1444 = int_to_ptr.vmem [resolvable:$true] %s1443
          %1446 = dma.vmem_to_hbm [thread:$0]  %s1444, 128, %s1441, %s1430
        $region68: #{tpu_custom_call.1} parent=55 // pred_fallthru
          _
      $region56: #{tpu_custom_call.1} parent=5 // pred_fallthru
        _
      %p1447 = scmp.le.s32.totalorder 2, %s22
      // Predicated region
      $region69: #{tpu_custom_call.1} parent=5 // pred_check
        %p1448 = pneg %p1447
      $region70: #{tpu_custom_call.1} parent=5 // pred_check_branch
        %1450 = sbr.rel (%p1448) target = $region72
      $region71: #{tpu_custom_call.1} parent=5 // pred_region
        %s1451 = ssub.s32 %s22, 2
        // Predicated region
        $region73: #{tpu_custom_call.1} parent=71 // pred_check
          %p1452 = pneg %p245
        $region74: #{tpu_custom_call.1} parent=71 // pred_check_branch
          %1454 = sbr.rel (%p1452) target = $region76
        $region75: #{tpu_custom_call.1} parent=71 // pred_region
          %s1455 = sand.u32 %s230, 1
          %s1456 = scalar_lea.sflag [#allocation6], %s1455
          %s1457 = sand.u32 %s230, 1
          %s1458 = smul.addr %s1457, 8
          %s1459 = scalar_lea.vmem [#allocation9], %s1458
          %1460 = dma.done %s1456, 128
        $region76: #{tpu_custom_call.1} parent=71 // pred_fallthru
          _
      $region72: #{tpu_custom_call.1} parent=5 // pred_fallthru
        _
    $region6: #{tpu_custom_call.1} parent=1 // loop_footer
      %s26 = sadd.s32 1, %s22
    $region7: #{tpu_custom_call.1} parent=1 // loop_footer_branch
      %21 = sbr.rel target = $region3
    $region8: #{tpu_custom_call.1} parent=1 // loop_exit
      _
    %1461 = vsyncpa [#allocation5], 1
    %s1462 = scalar_lea.sflag [#allocation5], 1
    %1463 = vsyncpa %s1462, 1
    %1464 = vsyncpa [#allocation8], 1
    %1465 = vsyncpa [#allocation6], 1
    %s1466 = scalar_lea.sflag [#allocation6], 1
    %1467 = vsyncpa %s1466, 1

</llo_original>
